<compile_context>
chip_gen: v7x
topology: tpu7x:2x2x1
jax: 0.10.0
libtpu: 0.0.40
codegen_flags: <defaults>
</compile_context>

<pallas_src>
import math
import jax
import jax.numpy as jnp
from jax.experimental import pallas as pl
from jax.experimental.pallas import tpu as pltpu

BN_EPS = 1e-5
LANE = 128
NEG_INF = -1e30


def _round_up(n, m):
    return ((n + m - 1) // m) * m


def _pad2(a, rows, cols):
    out = jnp.zeros((rows, cols), a.dtype)
    return out.at[: a.shape[0], : a.shape[1]].set(a)


def _vmem_specs(n):
    return [pl.BlockSpec(memory_space=pltpu.MemorySpace.VMEM) for _ in range(n)]


# ------------------------------ fused kernel ---------------------------------

def _make_fused_gin_kernel(num_layers, out_channels):
    """Fused kernel. Ref order:
       [A'_0..A'_{L-1} (bf16), x (bf16), w1'_0, w2_0, ..., hw1, hw2 (bf16),
        biases (f32, stacked rows: b1_0,b2_0,...,hb1,hb2), out (f32)]"""

    def kernel(*refs):
        a_refs = refs[:num_layers]
        x_ref = refs[num_layers]
        w_base = num_layers + 1
        n_w = 2 * num_layers + 2
        w_refs = refs[w_base: w_base + n_w]
        b_ref = refs[w_base + n_w]
        out_ref = refs[w_base + n_w + 1]

        h = x_ref[...]                                          # bf16 (npad, cpad)
        for l in range(num_layers):
            w1, w2 = w_refs[2 * l], w_refs[2 * l + 1]
            # GINConv (eps=0, 'sum'): residual folded into A' -> z = A' @ h
            z = jnp.dot(a_refs[l][...], h, preferred_element_type=jnp.float32)
            # apply_func: Linear1 (BN folded) -> ReLU -> Linear2 -> ReLU
            y = jnp.dot(z.astype(jnp.bfloat16), w1[...],
                        preferred_element_type=jnp.float32)
            y = jnp.maximum(y + b_ref[2 * l: 2 * l + 1, :], 0.0)       # f32 VPU
            y = jnp.dot(y.astype(jnp.bfloat16), w2[...],
                        preferred_element_type=jnp.float32)
            y = jnp.maximum(y + b_ref[2 * l + 1: 2 * l + 2, :], 0.0)   # f32 VPU
            h = y.astype(jnp.bfloat16)                           # next MXU operand

        # head: lin1 -> ReLU -> dropout (identity in eval) -> lin2 -> log_softmax
        hw1, hw2 = w_refs[2 * num_layers], w_refs[2 * num_layers + 1]
        hb1 = b_ref[2 * num_layers: 2 * num_layers + 1, :]
        hb2 = b_ref[2 * num_layers + 1: 2 * num_layers + 2, :]
        y = jnp.dot(h, hw1[...], preferred_element_type=jnp.float32) + hb1
        y = jnp.maximum(y, 0.0)
        y = jnp.dot(y.astype(jnp.bfloat16), hw2[...],
                    preferred_element_type=jnp.float32) + hb2
        # mask padded class lanes so the softmax reduction only sees real logits
        lane = jax.lax.broadcasted_iota(jnp.int32, y.shape, 1)
        y = jnp.where(lane < out_channels, y, NEG_INF)
        m = jnp.max(y, axis=-1, keepdims=True)
        s = y - m
        lse = jnp.log(jnp.sum(jnp.exp(s), axis=-1, keepdims=True))
        out_ref[...] = s - lse                                   # lane-dense store

    return kernel


# ---------------------- host-side one-time preparation ------------------------

def _fold_bn_into_linear(p):
    """Fold eval-mode BatchNorm1d (running stats) into the preceding Linear."""
    scale = p["gamma"] * jax.lax.rsqrt(p["var"] + BN_EPS)        # (1, hidden)
    w1f = p["w1"] * scale                                        # (in, hidden)
    b1f = (p["b1"] - p["mean"]) * scale + p["beta"]              # (1, hidden)
    return w1f, b1f


def prepare_gin_inputs(blocks, x, conv_params, head_params, num_layers):
    """Done ONCE per model/graph: BN folding, residual fold into A, zero
    padding to lane-dense shapes, bf16 casting of MXU operands, bias stacking."""
    assert len(blocks) == num_layers == len(conv_params)
    hidden = head_params["w1"].shape[0]
    out_c = head_params["w2"].shape[1]
    cpad = _round_up(max(x.shape[1], hidden, out_c), LANE)
    node_counts = [blocks[0].shape[1]] + [b.shape[0] for b in blocks]
    npad = _round_up(max(node_counts), LANE)

    a_args = []
    for a in blocks:
        d, s = a.shape
        ap = jnp.zeros((npad, npad), jnp.float32).at[:d, :s].set(a.astype(jnp.float32))
        idx = jnp.arange(d)
        # Residual fold: (1+eps)*h_dst with eps=0; DGL MFG convention that dst
        # nodes are the first num_dst src rows.
        ap = ap.at[idx, idx].add(1.0)
        a_args.append(ap.astype(jnp.bfloat16))

    x_arg = _pad2(x.astype(jnp.float32), npad, cpad).astype(jnp.bfloat16)

    w_args, biases = [], []
    for p in conv_params:
        w1f, b1f = _fold_bn_into_linear(p)
        w_args.append(_pad2(w1f, cpad, cpad).astype(jnp.bfloat16))
        w_args.append(_pad2(p["w2"], cpad, cpad).astype(jnp.bfloat16))
        biases.append(_pad2(b1f, 1, cpad))
        biases.append(_pad2(p["b2"], 1, cpad))
    w_args.append(_pad2(head_params["w1"], cpad, cpad).astype(jnp.bfloat16))
    w_args.append(_pad2(head_params["w2"], cpad, cpad).astype(jnp.bfloat16))
    biases.append(_pad2(head_params["b1"], 1, cpad))
    biases.append(_pad2(head_params["b2"], 1, cpad))

    brows = _round_up(len(biases), 8)
    b_arg = _pad2(jnp.concatenate(biases, axis=0), brows, cpad)  # f32 (8, cpad)

    args = (*a_args, x_arg, *w_args, b_arg)
    meta = dict(num_layers=num_layers, out_c=out_c, cpad=cpad, npad=npad,
                num_out=int(blocks[-1].shape[0]))
    return args, meta


def build_gin_forward(args, meta):
    """Build the jitted per-call path: single pallas_call + static output slice."""
    num_layers = meta["num_layers"]
    out_c, cpad, npad, num_out = meta["out_c"], meta["cpad"], meta["npad"], meta["num_out"]
    kernel = _make_fused_gin_kernel(num_layers, out_c)

    # 3 dots per layer (A'@h, @w1, @w2) + 2 head dots.
    flops = num_layers * (2 * npad * npad * cpad + 2 * 2 * npad * cpad * cpad) \
        + 2 * 2 * npad * cpad * cpad
    bytes_accessed = sum(int(a.size) * a.dtype.itemsize for a in args) + npad * cpad * 4
    cost = pl.CostEstimate(flops=flops, transcendentals=npad * cpad + npad,
                           bytes_accessed=bytes_accessed)

    call = pl.pallas_call(
        kernel,
        out_shape=jax.ShapeDtypeStruct((npad, cpad), jnp.float32),
        in_specs=_vmem_specs(len(args)),
        out_specs=pl.BlockSpec(memory_space=pltpu.MemorySpace.VMEM),
        cost_estimate=cost,
    )

    @jax.jit
    def fwd(*kernel_args):
        return call(*kernel_args)[:num_out, :out_c]

    return fwd


# ------------------------- parameter construction ----------------------------

def xavier_uniform_t(key, fan_in, fan_out, gain):
    # PyTorch Linear weight is (out, in); we store it transposed as (in, out).
    limit = gain * math.sqrt(6.0 / (fan_in + fan_out))
    return jax.random.uniform(key, (fan_in, fan_out), jnp.float32, -limit, limit)


def make_conv_params(key, fan_in, hidden):
    gain = math.sqrt(2.0)  # calculate_gain('relu')
    k1, k2 = jax.random.split(key)
    return {
        "w1": xavier_uniform_t(k1, fan_in, hidden, gain),
        "b1": jnp.zeros((1, hidden), jnp.float32),
        "gamma": jnp.ones((1, hidden), jnp.float32),
        "beta": jnp.zeros((1, hidden), jnp.float32),
        "mean": jnp.zeros((1, hidden), jnp.float32),
        "var": jnp.ones((1, hidden), jnp.float32),
        "w2": xavier_uniform_t(k2, hidden, hidden, gain),
        "b2": jnp.zeros((1, hidden), jnp.float32),
    }


def make_head_params(key, hidden, out_c):
    k1, k2 = jax.random.split(key)
    return {
        "w1": xavier_uniform_t(k1, hidden, hidden, 1.0),
        "b1": jnp.zeros((1, hidden), jnp.float32),
        "w2": xavier_uniform_t(k2, hidden, out_c, 1.0),
        "b2": jnp.zeros((1, out_c), jnp.float32),
    }


# ------------------------------- main ----------------------------------------

if __name__ == "__main__":
    in_channels, hidden_channels, out_channels, num_layers = 8, 32, 4, 3

    key = jax.random.PRNGKey(0)
    k_x, k_a, k_p = jax.random.split(key, 3)

    # Block sizes (dst, src) for a 3-layer neighborhood-sampled MFG stack.
    block_sizes = [(48, 64), (32, 48), (16, 32)]
    a_keys = jax.random.split(k_a, num_layers)
    blocks = [
        (jax.random.uniform(ak, (d, s)) < 0.3).astype(jnp.float32)
        for ak, (d, s) in zip(a_keys, block_sizes)
    ]

    # Input node features for the outermost block's src nodes.
    x = jax.random.normal(k_x, (block_sizes[0][1], in_channels), jnp.float32)

    p_keys = jax.random.split(k_p, num_layers + 1)
    conv_params = [make_conv_params(p_keys[0], in_channels, hidden_channels)]
    for i in range(1, num_layers):
        conv_params.append(make_conv_params(p_keys[i], hidden_channels, hidden_channels))
    head_params = make_head_params(p_keys[-1], hidden_channels, out_channels)

    # One-time host prep (BN fold, residual fold into A, padding, bf16 cast).
    args, meta = prepare_gin_inputs(blocks, x, conv_params, head_params, num_layers)
    gin_forward = build_gin_forward(args, meta)

    out = gin_forward(*args)
    out = jax.block_until_ready(out)
    assert out.shape == (block_sizes[-1][0], out_channels)
    assert bool(jnp.all(jnp.isfinite(out)))
    print("KERNEL_OK")
</pallas_src>

<mosaic_0001>
module attributes {stable_mosaic.version = 11 : i64} {
  func.func @kernel(%arg0: memref<128x128xbf16, #tpu.memory_space<vmem>>, %arg1: memref<128x128xbf16, #tpu.memory_space<vmem>>, %arg2: memref<128x128xbf16, #tpu.memory_space<vmem>>, %arg3: memref<128x128xbf16, #tpu.memory_space<vmem>>, %arg4: memref<128x128xbf16, #tpu.memory_space<vmem>>, %arg5: memref<128x128xbf16, #tpu.memory_space<vmem>>, %arg6: memref<128x128xbf16, #tpu.memory_space<vmem>>, %arg7: memref<128x128xbf16, #tpu.memory_space<vmem>>, %arg8: memref<128x128xbf16, #tpu.memory_space<vmem>>, %arg9: memref<128x128xbf16, #tpu.memory_space<vmem>>, %arg10: memref<128x128xbf16, #tpu.memory_space<vmem>>, %arg11: memref<128x128xbf16, #tpu.memory_space<vmem>>, %arg12: memref<8x128xf32, #tpu.memory_space<vmem>>, %arg13: memref<128x128xf32, #tpu.memory_space<vmem>>) attributes {dimension_semantics = [], scalar_prefetch = 0 : i64, scratch_operands = 0 : i64, tpu.core_type = #tpu.core_type<tc>} {
    %c0 = arith.constant 0 : index
    %c0_0 = arith.constant 0 : index
    %0 = vector.load %arg3[%c0, %c0_0] : memref<128x128xbf16, #tpu.memory_space<vmem>>, vector<128x128xbf16>
    %c0_1 = arith.constant 0 : index
    %c0_2 = arith.constant 0 : index
    %1 = vector.load %arg0[%c0_1, %c0_2] : memref<128x128xbf16, #tpu.memory_space<vmem>>, vector<128x128xbf16>
    %cst = arith.constant dense<0.000000e+00> : vector<128x128xf32>
    %2 = tpu.matmul %1, %0, %cst {dimension_numbers = #tpu.dot_dimension_numbers<[1], [0], [0], [1], [0, 0, 1, 1], [], []>} : vector<128x128xbf16>, vector<128x128xbf16>, vector<128x128xf32> -> vector<128x128xf32>
    %3 = arith.truncf %2 : vector<128x128xf32> to vector<128x128xbf16>
    %c0_3 = arith.constant 0 : index
    %c0_4 = arith.constant 0 : index
    %4 = vector.load %arg4[%c0_3, %c0_4] : memref<128x128xbf16, #tpu.memory_space<vmem>>, vector<128x128xbf16>
    %cst_5 = arith.constant dense<0.000000e+00> : vector<128x128xf32>
    %5 = tpu.matmul %3, %4, %cst_5 {dimension_numbers = #tpu.dot_dimension_numbers<[1], [0], [0], [1], [0, 0, 1, 1], [], []>} : vector<128x128xbf16>, vector<128x128xbf16>, vector<128x128xf32> -> vector<128x128xf32>
    %c0_6 = arith.constant 0 : index
    %c0_7 = arith.constant 0 : index
    %6 = vector.load %arg12[%c0_6, %c0_7] : memref<8x128xf32, #tpu.memory_space<vmem>>, vector<1x128xf32>
    %7 = vector.broadcast %6 : vector<1x128xf32> to vector<128x128xf32>
    %8 = arith.addf %5, %7 : vector<128x128xf32>
    %cst_8 = arith.constant 0.000000e+00 : f32
    %9 = vector.broadcast %cst_8 : f32 to vector<128x128xf32>
    %10 = arith.maximumf %8, %9 : vector<128x128xf32>
    %11 = arith.truncf %10 : vector<128x128xf32> to vector<128x128xbf16>
    %c0_9 = arith.constant 0 : index
    %c0_10 = arith.constant 0 : index
    %12 = vector.load %arg5[%c0_9, %c0_10] : memref<128x128xbf16, #tpu.memory_space<vmem>>, vector<128x128xbf16>
    %cst_11 = arith.constant dense<0.000000e+00> : vector<128x128xf32>
    %13 = tpu.matmul %11, %12, %cst_11 {dimension_numbers = #tpu.dot_dimension_numbers<[1], [0], [0], [1], [0, 0, 1, 1], [], []>} : vector<128x128xbf16>, vector<128x128xbf16>, vector<128x128xf32> -> vector<128x128xf32>
    %c1 = arith.constant 1 : index
    %c0_12 = arith.constant 0 : index
    %14 = vector.load %arg12[%c1, %c0_12] : memref<8x128xf32, #tpu.memory_space<vmem>>, vector<1x128xf32>
    %15 = vector.broadcast %14 : vector<1x128xf32> to vector<128x128xf32>
    %16 = arith.addf %13, %15 : vector<128x128xf32>
    %cst_13 = arith.constant 0.000000e+00 : f32
    %17 = vector.broadcast %cst_13 : f32 to vector<128x128xf32>
    %18 = arith.maximumf %16, %17 : vector<128x128xf32>
    %19 = arith.truncf %18 : vector<128x128xf32> to vector<128x128xbf16>
    %c0_14 = arith.constant 0 : index
    %c0_15 = arith.constant 0 : index
    %20 = vector.load %arg1[%c0_14, %c0_15] : memref<128x128xbf16, #tpu.memory_space<vmem>>, vector<128x128xbf16>
    %cst_16 = arith.constant dense<0.000000e+00> : vector<128x128xf32>
    %21 = tpu.matmul %20, %19, %cst_16 {dimension_numbers = #tpu.dot_dimension_numbers<[1], [0], [0], [1], [0, 0, 1, 1], [], []>} : vector<128x128xbf16>, vector<128x128xbf16>, vector<128x128xf32> -> vector<128x128xf32>
    %22 = arith.truncf %21 : vector<128x128xf32> to vector<128x128xbf16>
    %c0_17 = arith.constant 0 : index
    %c0_18 = arith.constant 0 : index
    %23 = vector.load %arg6[%c0_17, %c0_18] : memref<128x128xbf16, #tpu.memory_space<vmem>>, vector<128x128xbf16>
    %cst_19 = arith.constant dense<0.000000e+00> : vector<128x128xf32>
    %24 = tpu.matmul %22, %23, %cst_19 {dimension_numbers = #tpu.dot_dimension_numbers<[1], [0], [0], [1], [0, 0, 1, 1], [], []>} : vector<128x128xbf16>, vector<128x128xbf16>, vector<128x128xf32> -> vector<128x128xf32>
    %c2 = arith.constant 2 : index
    %c0_20 = arith.constant 0 : index
    %25 = vector.load %arg12[%c2, %c0_20] : memref<8x128xf32, #tpu.memory_space<vmem>>, vector<1x128xf32>
    %26 = vector.broadcast %25 : vector<1x128xf32> to vector<128x128xf32>
    %27 = arith.addf %24, %26 : vector<128x128xf32>
    %cst_21 = arith.constant 0.000000e+00 : f32
    %28 = vector.broadcast %cst_21 : f32 to vector<128x128xf32>
    %29 = arith.maximumf %27, %28 : vector<128x128xf32>
    %30 = arith.truncf %29 : vector<128x128xf32> to vector<128x128xbf16>
    %c0_22 = arith.constant 0 : index
    %c0_23 = arith.constant 0 : index
    %31 = vector.load %arg7[%c0_22, %c0_23] : memref<128x128xbf16, #tpu.memory_space<vmem>>, vector<128x128xbf16>
    %cst_24 = arith.constant dense<0.000000e+00> : vector<128x128xf32>
    %32 = tpu.matmul %30, %31, %cst_24 {dimension_numbers = #tpu.dot_dimension_numbers<[1], [0], [0], [1], [0, 0, 1, 1], [], []>} : vector<128x128xbf16>, vector<128x128xbf16>, vector<128x128xf32> -> vector<128x128xf32>
    %c3 = arith.constant 3 : index
    %c0_25 = arith.constant 0 : index
    %33 = vector.load %arg12[%c3, %c0_25] : memref<8x128xf32, #tpu.memory_space<vmem>>, vector<1x128xf32>
    %34 = vector.broadcast %33 : vector<1x128xf32> to vector<128x128xf32>
    %35 = arith.addf %32, %34 : vector<128x128xf32>
    %cst_26 = arith.constant 0.000000e+00 : f32
    %36 = vector.broadcast %cst_26 : f32 to vector<128x128xf32>
    %37 = arith.maximumf %35, %36 : vector<128x128xf32>
    %38 = arith.truncf %37 : vector<128x128xf32> to vector<128x128xbf16>
    %c0_27 = arith.constant 0 : index
    %c0_28 = arith.constant 0 : index
    %39 = vector.load %arg2[%c0_27, %c0_28] : memref<128x128xbf16, #tpu.memory_space<vmem>>, vector<128x128xbf16>
    %cst_29 = arith.constant dense<0.000000e+00> : vector<128x128xf32>
    %40 = tpu.matmul %39, %38, %cst_29 {dimension_numbers = #tpu.dot_dimension_numbers<[1], [0], [0], [1], [0, 0, 1, 1], [], []>} : vector<128x128xbf16>, vector<128x128xbf16>, vector<128x128xf32> -> vector<128x128xf32>
    %41 = arith.truncf %40 : vector<128x128xf32> to vector<128x128xbf16>
    %c0_30 = arith.constant 0 : index
    %c0_31 = arith.constant 0 : index
    %42 = vector.load %arg8[%c0_30, %c0_31] : memref<128x128xbf16, #tpu.memory_space<vmem>>, vector<128x128xbf16>
    %cst_32 = arith.constant dense<0.000000e+00> : vector<128x128xf32>
    %43 = tpu.matmul %41, %42, %cst_32 {dimension_numbers = #tpu.dot_dimension_numbers<[1], [0], [0], [1], [0, 0, 1, 1], [], []>} : vector<128x128xbf16>, vector<128x128xbf16>, vector<128x128xf32> -> vector<128x128xf32>
    %c4 = arith.constant 4 : index
    %c0_33 = arith.constant 0 : index
    %44 = vector.load %arg12[%c4, %c0_33] : memref<8x128xf32, #tpu.memory_space<vmem>>, vector<1x128xf32>
    %45 = vector.broadcast %44 : vector<1x128xf32> to vector<128x128xf32>
    %46 = arith.addf %43, %45 : vector<128x128xf32>
    %cst_34 = arith.constant 0.000000e+00 : f32
    %47 = vector.broadcast %cst_34 : f32 to vector<128x128xf32>
    %48 = arith.maximumf %46, %47 : vector<128x128xf32>
    %49 = arith.truncf %48 : vector<128x128xf32> to vector<128x128xbf16>
    %c0_35 = arith.constant 0 : index
    %c0_36 = arith.constant 0 : index
    %50 = vector.load %arg9[%c0_35, %c0_36] : memref<128x128xbf16, #tpu.memory_space<vmem>>, vector<128x128xbf16>
    %cst_37 = arith.constant dense<0.000000e+00> : vector<128x128xf32>
    %51 = tpu.matmul %49, %50, %cst_37 {dimension_numbers = #tpu.dot_dimension_numbers<[1], [0], [0], [1], [0, 0, 1, 1], [], []>} : vector<128x128xbf16>, vector<128x128xbf16>, vector<128x128xf32> -> vector<128x128xf32>
    %c5 = arith.constant 5 : index
    %c0_38 = arith.constant 0 : index
    %52 = vector.load %arg12[%c5, %c0_38] : memref<8x128xf32, #tpu.memory_space<vmem>>, vector<1x128xf32>
    %53 = vector.broadcast %52 : vector<1x128xf32> to vector<128x128xf32>
    %54 = arith.addf %51, %53 : vector<128x128xf32>
    %cst_39 = arith.constant 0.000000e+00 : f32
    %55 = vector.broadcast %cst_39 : f32 to vector<128x128xf32>
    %56 = arith.maximumf %54, %55 : vector<128x128xf32>
    %57 = arith.truncf %56 : vector<128x128xf32> to vector<128x128xbf16>
    %c6 = arith.constant 6 : index
    %c0_40 = arith.constant 0 : index
    %58 = vector.load %arg12[%c6, %c0_40] : memref<8x128xf32, #tpu.memory_space<vmem>>, vector<1x128xf32>
    %c7 = arith.constant 7 : index
    %c0_41 = arith.constant 0 : index
    %59 = vector.load %arg12[%c7, %c0_41] : memref<8x128xf32, #tpu.memory_space<vmem>>, vector<1x128xf32>
    %c0_42 = arith.constant 0 : index
    %c0_43 = arith.constant 0 : index
    %60 = vector.load %arg10[%c0_42, %c0_43] : memref<128x128xbf16, #tpu.memory_space<vmem>>, vector<128x128xbf16>
    %cst_44 = arith.constant dense<0.000000e+00> : vector<128x128xf32>
    %61 = tpu.matmul %57, %60, %cst_44 {dimension_numbers = #tpu.dot_dimension_numbers<[1], [0], [0], [1], [0, 0, 1, 1], [], []>} : vector<128x128xbf16>, vector<128x128xbf16>, vector<128x128xf32> -> vector<128x128xf32>
    %62 = vector.broadcast %58 : vector<1x128xf32> to vector<128x128xf32>
    %63 = arith.addf %61, %62 : vector<128x128xf32>
    %cst_45 = arith.constant 0.000000e+00 : f32
    %64 = vector.broadcast %cst_45 : f32 to vector<128x128xf32>
    %65 = arith.maximumf %63, %64 : vector<128x128xf32>
    %66 = arith.truncf %65 : vector<128x128xf32> to vector<128x128xbf16>
    %c0_46 = arith.constant 0 : index
    %c0_47 = arith.constant 0 : index
    %67 = vector.load %arg11[%c0_46, %c0_47] : memref<128x128xbf16, #tpu.memory_space<vmem>>, vector<128x128xbf16>
    %cst_48 = arith.constant dense<0.000000e+00> : vector<128x128xf32>
    %68 = tpu.matmul %66, %67, %cst_48 {dimension_numbers = #tpu.dot_dimension_numbers<[1], [0], [0], [1], [0, 0, 1, 1], [], []>} : vector<128x128xbf16>, vector<128x128xbf16>, vector<128x128xf32> -> vector<128x128xf32>
    %69 = vector.broadcast %59 : vector<1x128xf32> to vector<128x128xf32>
    %70 = arith.addf %68, %69 : vector<128x128xf32>
    %71 = tpu.iota {dimensions = array<i32: 1>} : vector<128x128xi32>
    %c4_i32 = arith.constant 4 : i32
    %72 = vector.broadcast %c4_i32 : i32 to vector<128x128xi32>
    %73 = arith.cmpi slt, %71, %72 : vector<128x128xi32>
    %cst_49 = arith.constant -1.000000e+30 : f32
    %74 = vector.broadcast %cst_49 : f32 to vector<128x128xf32>
    %75 = arith.select %73, %70, %74 : vector<128x128xi1>, vector<128x128xf32>
    %cst_50 = arith.constant dense<0xFF800000> : vector<128xf32>
    %76 = vector.multi_reduction <maximumf>, %75, %cst_50 [1] : vector<128x128xf32> to vector<128xf32>
    %77 = vector.shape_cast %76 : vector<128xf32> to vector<128x1xf32>
    %78 = vector.broadcast %77 : vector<128x1xf32> to vector<128x128xf32>
    %79 = arith.subf %75, %78 : vector<128x128xf32>
    %80 = math.exp %79 : vector<128x128xf32>
    %cst_51 = arith.constant dense<0.000000e+00> : vector<128xf32>
    %81 = vector.multi_reduction <add>, %80, %cst_51 [1] : vector<128x128xf32> to vector<128xf32>
    %82 = vector.shape_cast %81 : vector<128xf32> to vector<128x1xf32>
    %83 = math.log %82 : vector<128x1xf32>
    %84 = vector.broadcast %83 : vector<128x1xf32> to vector<128x128xf32>
    %85 = arith.subf %79, %84 : vector<128x128xf32>
    %c0_52 = arith.constant 0 : index
    %c0_53 = arith.constant 0 : index
    %86 = vector.load %arg13[%c0_52, %c0_53] : memref<128x128xf32, #tpu.memory_space<vmem>>, vector<128x128xf32>
    tpu.vector_store %arg13[%c0_52, %c0_53], %85 {strides = array<i32>} : memref<128x128xf32, #tpu.memory_space<vmem>>, vector<128x128xf32>,
    return
  }
}

</mosaic_0001>

<llo_original>
// kernel: fwd.1
$region0: #{fwd.1}
  #allocation0 [shape = 'u32[]', space=smem, size = 0x4, offset = 0x4, fixed_abs, tag = 'smem constant byte address 0x4 - core index']
  #allocation1 [shape = 'u32[144,128]{1,0:T(1,128)}', space=vmem, size = 0x12000, scoped, tag = 'internal scratch']
  %s0 = inlined_call_operand.hbm [shape: bf16[128,128], index: 0, kind: input, shape index: {}]
  %s1 = inlined_call_operand.hbm [shape: bf16[128,128], index: 1, kind: input, shape index: {}]
  %s2 = inlined_call_operand.hbm [shape: bf16[128,128], index: 2, kind: input, shape index: {}]
  %s3 = inlined_call_operand.hbm [shape: bf16[128,128], index: 3, kind: input, shape index: {}]
  %s4 = inlined_call_operand.hbm [shape: bf16[128,128], index: 4, kind: input, shape index: {}]
  %s5 = inlined_call_operand.hbm [shape: bf16[128,128], index: 5, kind: input, shape index: {}]
  %s6 = inlined_call_operand.hbm [shape: bf16[128,128], index: 6, kind: input, shape index: {}]
  %s7 = inlined_call_operand.hbm [shape: bf16[128,128], index: 7, kind: input, shape index: {}]
  %s8 = inlined_call_operand.hbm [shape: bf16[128,128], index: 8, kind: input, shape index: {}]
  %s9 = inlined_call_operand.hbm [shape: bf16[128,128], index: 9, kind: input, shape index: {}]
  %s10 = inlined_call_operand.hbm [shape: bf16[128,128], index: 10, kind: input, shape index: {}]
  %s11 = inlined_call_operand.hbm [shape: bf16[128,128], index: 11, kind: input, shape index: {}]
  %s12 = inlined_call_operand.vmem [shape: f32[8,128], index: 12, kind: input, shape index: {}]
  %s13 = inlined_call_operand.vmem [shape: f32[128,128], index: 13, kind: output, shape index: {}]
  %s14 = sld [smem:[#allocation0]]
  $region110: #{fwd.1} parent=0
    _
  %s16 = ssub.s32 1, %s14
  %s17 = scalar_select 0, %s16, %s14
  $region1: #{fwd.1} parent=0
    #allocation2 [shape = 'u8[32768]{0}', space=vmem, size = 0x8000, scoped, tag = 'input window, operand 0, single buffered']
    #allocation3 [shape = 's32[1]{0}', space=sflag, size = 0x4, scoped, tag = 'scoped memory for fwd.1']
    #allocation4 [shape = 'u8[32768]{0}', space=vmem, size = 0x8000, scoped, tag = 'input window, operand 1, single buffered']
    #allocation5 [shape = 's32[1]{0}', space=sflag, size = 0x4, scoped, tag = 'scoped memory for fwd.1']
    #allocation6 [shape = 'u8[32768]{0}', space=vmem, size = 0x8000, scoped, tag = 'input window, operand 2, single buffered']
    #allocation7 [shape = 'u8[32768]{0}', space=vmem, size = 0x8000, scoped, tag = 'input window, operand 3, single buffered']
    #allocation8 [shape = 's32[1]{0}', space=sflag, size = 0x4, scoped, tag = 'scoped memory for fwd.1']
    #allocation9 [shape = 'u8[32768]{0}', space=vmem, size = 0x8000, scoped, tag = 'input window, operand 4, single buffered']
    #allocation10 [shape = 'u8[32768]{0}', space=vmem, size = 0x8000, scoped, tag = 'input window, operand 5, single buffered']
    #allocation11 [shape = 's32[1]{0}', space=sflag, size = 0x4, scoped, tag = 'scoped memory for fwd.1']
    #allocation12 [shape = 'u8[32768]{0}', space=vmem, size = 0x8000, scoped, tag = 'input window, operand 6, single buffered']
    #allocation13 [shape = 'u8[32768]{0}', space=vmem, size = 0x8000, scoped, tag = 'input window, operand 7, single buffered']
    #allocation14 [shape = 's32[1]{0}', space=sflag, size = 0x4, scoped, tag = 'scoped memory for fwd.1']
    #allocation15 [shape = 'u8[32768]{0}', space=vmem, size = 0x8000, scoped, tag = 'input window, operand 8, single buffered']
    #allocation16 [shape = 'u8[32768]{0}', space=vmem, size = 0x8000, scoped, tag = 'input window, operand 9, single buffered']
    #allocation17 [shape = 's32[1]{0}', space=sflag, size = 0x4, scoped, tag = 'scoped memory for fwd.1']
    #allocation18 [shape = 'u8[32768]{0}', space=vmem, size = 0x8000, scoped, tag = 'input window, operand 10, single buffered']
    #allocation19 [shape = 'u8[32768]{0}', space=vmem, size = 0x8000, scoped, tag = 'input window, operand 11, single buffered']
    #allocation20 [shape = 's32[1]{0}', space=sflag, size = 0x4, scoped, tag = 'scoped memory for fwd.1']
    %18 = vsyncpa [#allocation3], 0
    %19 = vsyncpa [#allocation5], 0
    %20 = vsyncpa [#allocation8], 0
    %21 = vsyncpa [#allocation11], 0
    %22 = vsyncpa [#allocation14], 0
    %23 = vsyncpa [#allocation17], 0
    %24 = vsyncpa [#allocation20], 0
    // Predicated region
    $region2: #{fwd.1} parent=1 // pred_check
      _
    $region3: #{fwd.1} parent=1 // pred_check_branch
      %26 = sbr.rel (0) target = $region5
    $region4: #{fwd.1} parent=1 // pred_region
      %s28 = ssub.s32 1024, 1024
      %29 = vsyncadd [#allocation3], %s28
      %s30 = sshll.u32 [#allocation2], 4
      %s31 = int_to_ptr.vmem [resolvable:$true] %s30
      %36 = dma.hbm_to_vmem [thread:$0]  %s0, 1024, %s31, [#allocation3], 64, 64, 4
    $region5: #{fwd.1} parent=1 // pred_fallthru
      _
    // Predicated region
    $region6: #{fwd.1} parent=1 // pred_check
      _
    $region7: #{fwd.1} parent=1 // pred_check_branch
      %38 = sbr.rel (0) target = $region9
    $region8: #{fwd.1} parent=1 // pred_region
      %s40 = ssub.s32 1024, 1024
      %41 = vsyncadd [#allocation5], %s40
      %s42 = sshll.u32 [#allocation4], 4
      %s43 = int_to_ptr.vmem [resolvable:$true] %s42
      %48 = dma.hbm_to_vmem [thread:$0]  %s1, 1024, %s43, [#allocation5], 64, 64, 4
    $region9: #{fwd.1} parent=1 // pred_fallthru
      _
    // Predicated region
    $region10: #{fwd.1} parent=1 // pred_check
      _
    $region11: #{fwd.1} parent=1 // pred_check_branch
      %50 = sbr.rel (0) target = $region13
    $region12: #{fwd.1} parent=1 // pred_region
      %s52 = ssub.s32 1024, 1024
      %53 = vsyncadd [#allocation5], %s52
      %s54 = sshll.u32 [#allocation6], 4
      %s55 = int_to_ptr.vmem [resolvable:$true] %s54
      %60 = dma.hbm_to_vmem [thread:$0]  %s2, 1024, %s55, [#allocation5], 64, 64, 4
    $region13: #{fwd.1} parent=1 // pred_fallthru
      _
    // Predicated region
    $region14: #{fwd.1} parent=1 // pred_check
      _
    $region15: #{fwd.1} parent=1 // pred_check_branch
      %62 = sbr.rel (0) target = $region17
    $region16: #{fwd.1} parent=1 // pred_region
      %s64 = ssub.s32 1024, 1024
      %65 = vsyncadd [#allocation8], %s64
      %s66 = sshll.u32 [#allocation7], 4
      %s67 = int_to_ptr.vmem [resolvable:$true] %s66
      %72 = dma.hbm_to_vmem [thread:$0]  %s3, 1024, %s67, [#allocation8], 64, 64, 4
    $region17: #{fwd.1} parent=1 // pred_fallthru
      _
    // Predicated region
    $region18: #{fwd.1} parent=1 // pred_check
      _
    $region19: #{fwd.1} parent=1 // pred_check_branch
      %74 = sbr.rel (0) target = $region21
    $region20: #{fwd.1} parent=1 // pred_region
      %s76 = ssub.s32 1024, 1024
      %77 = vsyncadd [#allocation8], %s76
      %s78 = sshll.u32 [#allocation9], 4
      %s79 = int_to_ptr.vmem [resolvable:$true] %s78
      %84 = dma.hbm_to_vmem [thread:$0]  %s4, 1024, %s79, [#allocation8], 64, 64, 4
    $region21: #{fwd.1} parent=1 // pred_fallthru
      _
    // Predicated region
    $region22: #{fwd.1} parent=1 // pred_check
      _
    $region23: #{fwd.1} parent=1 // pred_check_branch
      %86 = sbr.rel (0) target = $region25
    $region24: #{fwd.1} parent=1 // pred_region
      %s88 = ssub.s32 1024, 1024
      %89 = vsyncadd [#allocation11], %s88
      %s90 = sshll.u32 [#allocation10], 4
      %s91 = int_to_ptr.vmem [resolvable:$true] %s90
      %96 = dma.hbm_to_vmem [thread:$0]  %s5, 1024, %s91, [#allocation11], 64, 64, 4
    $region25: #{fwd.1} parent=1 // pred_fallthru
      _
    // Predicated region
    $region26: #{fwd.1} parent=1 // pred_check
      _
    $region27: #{fwd.1} parent=1 // pred_check_branch
      %98 = sbr.rel (0) target = $region29
    $region28: #{fwd.1} parent=1 // pred_region
      %s100 = ssub.s32 1024, 1024
      %101 = vsyncadd [#allocation11], %s100
      %s102 = sshll.u32 [#allocation12], 4
      %s103 = int_to_ptr.vmem [resolvable:$true] %s102
      %108 = dma.hbm_to_vmem [thread:$0]  %s6, 1024, %s103, [#allocation11], 64, 64, 4
    $region29: #{fwd.1} parent=1 // pred_fallthru
      _
    // Predicated region
    $region30: #{fwd.1} parent=1 // pred_check
      _
    $region31: #{fwd.1} parent=1 // pred_check_branch
      %110 = sbr.rel (0) target = $region33
    $region32: #{fwd.1} parent=1 // pred_region
      %s112 = ssub.s32 1024, 1024
      %113 = vsyncadd [#allocation14], %s112
      %s114 = sshll.u32 [#allocation13], 4
      %s115 = int_to_ptr.vmem [resolvable:$true] %s114
      %120 = dma.hbm_to_vmem [thread:$0]  %s7, 1024, %s115, [#allocation14], 64, 64, 4
    $region33: #{fwd.1} parent=1 // pred_fallthru
      _
    // Predicated region
    $region34: #{fwd.1} parent=1 // pred_check
      _
    $region35: #{fwd.1} parent=1 // pred_check_branch
      %122 = sbr.rel (0) target = $region37
    $region36: #{fwd.1} parent=1 // pred_region
      %s124 = ssub.s32 1024, 1024
      %125 = vsyncadd [#allocation14], %s124
      %s126 = sshll.u32 [#allocation15], 4
      %s127 = int_to_ptr.vmem [resolvable:$true] %s126
      %132 = dma.hbm_to_vmem [thread:$0]  %s8, 1024, %s127, [#allocation14], 64, 64, 4
    $region37: #{fwd.1} parent=1 // pred_fallthru
      _
    // Predicated region
    $region38: #{fwd.1} parent=1 // pred_check
      _
    $region39: #{fwd.1} parent=1 // pred_check_branch
      %134 = sbr.rel (0) target = $region41
    $region40: #{fwd.1} parent=1 // pred_region
      %s136 = ssub.s32 1024, 1024
      %137 = vsyncadd [#allocation17], %s136
      %s138 = sshll.u32 [#allocation16], 4
      %s139 = int_to_ptr.vmem [resolvable:$true] %s138
      %144 = dma.hbm_to_vmem [thread:$0]  %s9, 1024, %s139, [#allocation17], 64, 64, 4
    $region41: #{fwd.1} parent=1 // pred_fallthru
      _
    // Predicated region
    $region42: #{fwd.1} parent=1 // pred_check
      _
    $region43: #{fwd.1} parent=1 // pred_check_branch
      %146 = sbr.rel (0) target = $region45
    $region44: #{fwd.1} parent=1 // pred_region
      %s148 = ssub.s32 1024, 1024
      %149 = vsyncadd [#allocation17], %s148
      %s150 = sshll.u32 [#allocation18], 4
      %s151 = int_to_ptr.vmem [resolvable:$true] %s150
      %156 = dma.hbm_to_vmem [thread:$0]  %s10, 1024, %s151, [#allocation17], 64, 64, 4
    $region45: #{fwd.1} parent=1 // pred_fallthru
      _
    // Predicated region
    $region46: #{fwd.1} parent=1 // pred_check
      _
    $region47: #{fwd.1} parent=1 // pred_check_branch
      %158 = sbr.rel (0) target = $region49
    $region48: #{fwd.1} parent=1 // pred_region
      %s160 = ssub.s32 1024, 1024
      %161 = vsyncadd [#allocation20], %s160
      %s162 = sshll.u32 [#allocation19], 4
      %s163 = int_to_ptr.vmem [resolvable:$true] %s162
      %168 = dma.hbm_to_vmem [thread:$0]  %s11, 1024, %s163, [#allocation20], 64, 64, 4
    $region49: #{fwd.1} parent=1 // pred_fallthru
      _
    // Predicated region
    $region50: #{fwd.1} parent=1 // pred_check
      _
    $region51: #{fwd.1} parent=1 // pred_check_branch
      %170 = sbr.rel (0) target = $region53
    $region52: #{fwd.1} parent=1 // pred_region
      _
    $region53: #{fwd.1} parent=1 // pred_fallthru
      _
    // Predicated region
    $region54: #{fwd.1} parent=1 // pred_check
      _
    $region55: #{fwd.1} parent=1 // pred_check_branch
      %172 = sbr.rel (0) target = $region57
    $region56: #{fwd.1} parent=1 // pred_region
      %173 = dma.done [#allocation3], 1024
    $region57: #{fwd.1} parent=1 // pred_fallthru
      _
    // Predicated region
    $region58: #{fwd.1} parent=1 // pred_check
      _
    $region59: #{fwd.1} parent=1 // pred_check_branch
      %175 = sbr.rel (0) target = $region61
    $region60: #{fwd.1} parent=1 // pred_region
      %176 = dma.done [#allocation5], 1024
    $region61: #{fwd.1} parent=1 // pred_fallthru
      _
    // Predicated region
    $region62: #{fwd.1} parent=1 // pred_check
      _
    $region63: #{fwd.1} parent=1 // pred_check_branch
      %178 = sbr.rel (0) target = $region65
    $region64: #{fwd.1} parent=1 // pred_region
      %179 = dma.done [#allocation5], 1024
    $region65: #{fwd.1} parent=1 // pred_fallthru
      _
    // Predicated region
    $region66: #{fwd.1} parent=1 // pred_check
      _
    $region67: #{fwd.1} parent=1 // pred_check_branch
      %181 = sbr.rel (0) target = $region69
    $region68: #{fwd.1} parent=1 // pred_region
      %182 = dma.done [#allocation8], 1024
    $region69: #{fwd.1} parent=1 // pred_fallthru
      _
    // Predicated region
    $region70: #{fwd.1} parent=1 // pred_check
      _
    $region71: #{fwd.1} parent=1 // pred_check_branch
      %184 = sbr.rel (0) target = $region73
    $region72: #{fwd.1} parent=1 // pred_region
      %185 = dma.done [#allocation8], 1024
    $region73: #{fwd.1} parent=1 // pred_fallthru
      _
    // Predicated region
    $region74: #{fwd.1} parent=1 // pred_check
      _
    $region75: #{fwd.1} parent=1 // pred_check_branch
      %187 = sbr.rel (0) target = $region77
    $region76: #{fwd.1} parent=1 // pred_region
      %188 = dma.done [#allocation11], 1024
    $region77: #{fwd.1} parent=1 // pred_fallthru
      _
    // Predicated region
    $region78: #{fwd.1} parent=1 // pred_check
      _
    $region79: #{fwd.1} parent=1 // pred_check_branch
      %190 = sbr.rel (0) target = $region81
    $region80: #{fwd.1} parent=1 // pred_region
      %191 = dma.done [#allocation11], 1024
    $region81: #{fwd.1} parent=1 // pred_fallthru
      _
    // Predicated region
    $region82: #{fwd.1} parent=1 // pred_check
      _
    $region83: #{fwd.1} parent=1 // pred_check_branch
      %193 = sbr.rel (0) target = $region85
    $region84: #{fwd.1} parent=1 // pred_region
      %194 = dma.done [#allocation14], 1024
    $region85: #{fwd.1} parent=1 // pred_fallthru
      _
    // Predicated region
    $region86: #{fwd.1} parent=1 // pred_check
      _
    $region87: #{fwd.1} parent=1 // pred_check_branch
      %196 = sbr.rel (0) target = $region89
    $region88: #{fwd.1} parent=1 // pred_region
      %197 = dma.done [#allocation14], 1024
    $region89: #{fwd.1} parent=1 // pred_fallthru
      _
    // Predicated region
    $region90: #{fwd.1} parent=1 // pred_check
      _
    $region91: #{fwd.1} parent=1 // pred_check_branch
      %199 = sbr.rel (0) target = $region93
    $region92: #{fwd.1} parent=1 // pred_region
      %200 = dma.done [#allocation17], 1024
    $region93: #{fwd.1} parent=1 // pred_fallthru
      _
    // Predicated region
    $region94: #{fwd.1} parent=1 // pred_check
      _
    $region95: #{fwd.1} parent=1 // pred_check_branch
      %202 = sbr.rel (0) target = $region97
    $region96: #{fwd.1} parent=1 // pred_region
      %203 = dma.done [#allocation17], 1024
    $region97: #{fwd.1} parent=1 // pred_fallthru
      _
    // Predicated region
    $region98: #{fwd.1} parent=1 // pred_check
      _
    $region99: #{fwd.1} parent=1 // pred_check_branch
      %205 = sbr.rel (0) target = $region101
    $region100: #{fwd.1} parent=1 // pred_region
      %206 = dma.done [#allocation20], 1024
    $region101: #{fwd.1} parent=1 // pred_fallthru
      _
    %v208 = vld [vmem:[#allocation7] sm:$0xf]
    %v209 = vld [vmem:[#allocation7 + $0x4] sm:$0xf]
    %v210 = vld [vmem:[#allocation7 + $0x8] sm:$0xf]
    %v211 = vld [vmem:[#allocation7 + $0xc] sm:$0xf]
    %v212 = vld [vmem:[#allocation7 + $0x10] sm:$0xf]
    %v213 = vld [vmem:[#allocation7 + $0x14] sm:$0xf]
    %v214 = vld [vmem:[#allocation7 + $0x18] sm:$0xf]
    %v215 = vld [vmem:[#allocation7 + $0x1c] sm:$0xf]
    %v216 = vld [vmem:[#allocation7 + $0x20] sm:$0xf]
    %v217 = vld [vmem:[#allocation7 + $0x24] sm:$0xf]
    %v218 = vld [vmem:[#allocation7 + $0x28] sm:$0xf]
    %v219 = vld [vmem:[#allocation7 + $0x2c] sm:$0xf]
    %v220 = vld [vmem:[#allocation7 + $0x30] sm:$0xf]
    %v221 = vld [vmem:[#allocation7 + $0x34] sm:$0xf]
    %v222 = vld [vmem:[#allocation7 + $0x38] sm:$0xf]
    %v223 = vld [vmem:[#allocation7 + $0x3c] sm:$0xf]
    %v224 = vld [vmem:[#allocation2] sm:$0xf]
    %v225 = vld [vmem:[#allocation2 + $0x4] sm:$0xf]
    %v226 = vld [vmem:[#allocation2 + $0x8] sm:$0xf]
    %v227 = vld [vmem:[#allocation2 + $0xc] sm:$0xf]
    %v228 = vld [vmem:[#allocation2 + $0x10] sm:$0xf]
    %v229 = vld [vmem:[#allocation2 + $0x14] sm:$0xf]
    %v230 = vld [vmem:[#allocation2 + $0x18] sm:$0xf]
    %v231 = vld [vmem:[#allocation2 + $0x1c] sm:$0xf]
    %v232 = vld [vmem:[#allocation2 + $0x20] sm:$0xf]
    %v233 = vld [vmem:[#allocation2 + $0x24] sm:$0xf]
    %v234 = vld [vmem:[#allocation2 + $0x28] sm:$0xf]
    %v235 = vld [vmem:[#allocation2 + $0x2c] sm:$0xf]
    %v236 = vld [vmem:[#allocation2 + $0x30] sm:$0xf]
    %v237 = vld [vmem:[#allocation2 + $0x34] sm:$0xf]
    %v238 = vld [vmem:[#allocation2 + $0x38] sm:$0xf]
    %v239 = vld [vmem:[#allocation2 + $0x3c] sm:$0xf]
    %v256 = vunpack.c.l.b16 %v224
    %v257 = vunpack.c.l.b16 %v225
    %v258 = vunpack.c.l.b16 %v226
    %v259 = vunpack.c.l.b16 %v227
    %v260 = vunpack.c.l.b16 %v228
    %v261 = vunpack.c.l.b16 %v229
    %v262 = vunpack.c.l.b16 %v230
    %v263 = vunpack.c.l.b16 %v231
    %v264 = vunpack.c.l.b16 %v232
    %v265 = vunpack.c.l.b16 %v233
    %v266 = vunpack.c.l.b16 %v234
    %v267 = vunpack.c.l.b16 %v235
    %v268 = vunpack.c.l.b16 %v236
    %v269 = vunpack.c.l.b16 %v237
    %v270 = vunpack.c.l.b16 %v238
    %v271 = vunpack.c.l.b16 %v239
    %v272 = vpack.c.b16 %v257, %v256
    %v273 = vpack.c.b16 %v259, %v258
    %v274 = vpack.c.b16 %v261, %v260
    %v275 = vpack.c.b16 %v263, %v262
    %v276 = vpack.c.b16 %v265, %v264
    %v277 = vpack.c.b16 %v267, %v266
    %v278 = vpack.c.b16 %v269, %v268
    %v279 = vpack.c.b16 %v271, %v270
    %v304 = vunpack.c.l.b16 %v208
    %v305 = vunpack.c.l.b16 %v209
    %v306 = vunpack.c.l.b16 %v210
    %v307 = vunpack.c.l.b16 %v211
    %v308 = vunpack.c.l.b16 %v212
    %v309 = vunpack.c.l.b16 %v213
    %v310 = vunpack.c.l.b16 %v214
    %v311 = vunpack.c.l.b16 %v215
    %v312 = vunpack.c.l.b16 %v216
    %v313 = vunpack.c.l.b16 %v217
    %v314 = vunpack.c.l.b16 %v218
    %v315 = vunpack.c.l.b16 %v219
    %v316 = vunpack.c.l.b16 %v220
    %v317 = vunpack.c.l.b16 %v221
    %v318 = vunpack.c.l.b16 %v222
    %v319 = vunpack.c.l.b16 %v223
    %v320 = vpack.c.b16 %v305, %v304
    %v321 = vpack.c.b16 %v307, %v306
    %v322 = vpack.c.b16 %v309, %v308
    %v323 = vpack.c.b16 %v311, %v310
    %v324 = vpack.c.b16 %v313, %v312
    %v325 = vpack.c.b16 %v315, %v314
    %v326 = vpack.c.b16 %v317, %v316
    %v327 = vpack.c.b16 %v319, %v318
    %336 = vmatprep.subr.bf16.mxu0 0
    %337 = vmatpush1.bf16.msra.mxu0 %v320
    %338 = vmatprep.subr.bf16.mxu0 0
    %339 = vmatpush1.bf16.msra.mxu0 %v321
    %340 = vmatprep.subr.bf16.mxu0 0
    %341 = vmatpush1.bf16.msra.mxu0 %v322
    %342 = vmatprep.subr.bf16.mxu0 0
    %343 = vmatpush1.bf16.msra.mxu0 %v323
    %344 = vmatprep.subr.bf16.mxu0 0
    %345 = vmatpush1.bf16.msra.mxu0 %v324
    %346 = vmatprep.subr.bf16.mxu0 0
    %347 = vmatpush1.bf16.msra.mxu0 %v325
    %348 = vmatprep.subr.bf16.mxu0 0
    %349 = vmatpush1.bf16.msra.mxu0 %v326
    %350 = vmatprep.subr.bf16.mxu0 0
    %351 = vmatpush1.bf16.msra.mxu0 %v327
    %352 = vmatprep.subr.bf16.mxu0 0
    %353 = vmatpush1.bf16.msra.mxu0 0
    %354 = vmatprep.subr.bf16.mxu0 0
    %355 = vmatpush1.bf16.msra.mxu0 0
    %356 = vmatprep.subr.bf16.mxu0 0
    %357 = vmatpush1.bf16.msra.mxu0 0
    %358 = vmatprep.subr.bf16.mxu0 0
    %359 = vmatpush1.bf16.msra.mxu0 0
    %360 = vmatprep.subr.bf16.mxu0 0
    %361 = vmatpush1.bf16.msra.mxu0 0
    %362 = vmatprep.subr.bf16.mxu0 0
    %363 = vmatpush1.bf16.msra.mxu0 0
    %364 = vmatprep.subr.bf16.mxu0 0
    %365 = vmatpush1.bf16.msra.mxu0 0
    %366 = vmatprep.subr.bf16.mxu0 0
    %367 = vmatpush1.bf16.msra.mxu0 0
    %368 = vmatprep.mubr.bf16.mxu0 0
    %369 = vmatmul.mubr.bf16.gmra.mrb[0].mxu0 %v272
    %v370 = vpop.f32.mrb[0].mxu0
    %v371 = vadd.f32 0.0, %v370
    %v372 = vpop.f32.mrb[0].mxu0
    %v373 = vpop.f32.mrb[0].mxu0
    %v374 = vadd.f32 0.0, %v373
    %v375 = vpop.f32.mrb[0].mxu0
    %376 = vmatprep.mubr.bf16.mxu0 0
    %377 = vmatmul.mubr.bf16.gmra.mrb[0].mxu0 %v273
    %v378 = vpop.f32.mrb[0].mxu0
    %v379 = vadd.f32 0.0, %v378
    %v380 = vpop.f32.mrb[0].mxu0
    %v381 = vpop.f32.mrb[0].mxu0
    %v382 = vadd.f32 0.0, %v381
    %v383 = vpop.f32.mrb[0].mxu0
    %384 = vmatprep.mubr.bf16.mxu0 0
    %385 = vmatmul.mubr.bf16.gmra.mrb[0].mxu0 %v274
    %v386 = vpop.f32.mrb[0].mxu0
    %v387 = vadd.f32 0.0, %v386
    %v388 = vpop.f32.mrb[0].mxu0
    %v389 = vpop.f32.mrb[0].mxu0
    %v390 = vadd.f32 0.0, %v389
    %v391 = vpop.f32.mrb[0].mxu0
    %392 = vmatprep.mubr.bf16.mxu0 0
    %393 = vmatmul.mubr.bf16.gmra.mrb[0].mxu0 %v275
    %v394 = vpop.f32.mrb[0].mxu0
    %v395 = vadd.f32 0.0, %v394
    %v396 = vpop.f32.mrb[0].mxu0
    %v397 = vpop.f32.mrb[0].mxu0
    %v398 = vadd.f32 0.0, %v397
    %v399 = vpop.f32.mrb[0].mxu0
    %400 = vmatprep.mubr.bf16.mxu0 0
    %401 = vmatmul.mubr.bf16.gmra.mrb[0].mxu0 %v276
    %v402 = vpop.f32.mrb[0].mxu0
    %v403 = vadd.f32 0.0, %v402
    %v404 = vpop.f32.mrb[0].mxu0
    %v405 = vpop.f32.mrb[0].mxu0
    %v406 = vadd.f32 0.0, %v405
    %v407 = vpop.f32.mrb[0].mxu0
    %408 = vmatprep.mubr.bf16.mxu0 0
    %409 = vmatmul.mubr.bf16.gmra.mrb[0].mxu0 %v277
    %v410 = vpop.f32.mrb[0].mxu0
    %v411 = vadd.f32 0.0, %v410
    %v412 = vpop.f32.mrb[0].mxu0
    %v413 = vpop.f32.mrb[0].mxu0
    %v414 = vadd.f32 0.0, %v413
    %v415 = vpop.f32.mrb[0].mxu0
    %416 = vmatprep.mubr.bf16.mxu0 0
    %417 = vmatmul.mubr.bf16.gmra.mrb[0].mxu0 %v278
    %v418 = vpop.f32.mrb[0].mxu0
    %v419 = vadd.f32 0.0, %v418
    %v420 = vpop.f32.mrb[0].mxu0
    %v421 = vpop.f32.mrb[0].mxu0
    %v422 = vadd.f32 0.0, %v421
    %v423 = vpop.f32.mrb[0].mxu0
    %424 = vmatprep.mubr.bf16.mxu0 0
    %425 = vmatmul.mubr.bf16.gmra.mrb[0].mxu0 %v279
    %v426 = vpop.f32.mrb[0].mxu0
    %v427 = vadd.f32 0.0, %v426
    %v428 = vpop.f32.mrb[0].mxu0
    %v429 = vpop.f32.mrb[0].mxu0
    %v430 = vadd.f32 0.0, %v429
    %v431 = vpop.f32.mrb[0].mxu0
    %432 = vdwg.mxu0
    %v433 = vpack.c.bf16 %v374, %v371
    %v434 = vpack.c.bf16 %v382, %v379
    %v435 = vpack.c.bf16 %v390, %v387
    %v436 = vpack.c.bf16 %v398, %v395
    %v437 = vpack.c.bf16 %v406, %v403
    %v438 = vpack.c.bf16 %v414, %v411
    %v439 = vpack.c.bf16 %v422, %v419
    %v440 = vpack.c.bf16 %v430, %v427
    %v441 = vld [vmem:[#allocation9] sm:$0xf]
    %v442 = vld [vmem:[#allocation9 + $0x4] sm:$0xf]
    %v443 = vld [vmem:[#allocation9 + $0x8] sm:$0xf]
    %v444 = vld [vmem:[#allocation9 + $0xc] sm:$0xf]
    %v445 = vld [vmem:[#allocation9 + $0x10] sm:$0xf]
    %v446 = vld [vmem:[#allocation9 + $0x14] sm:$0xf]
    %v447 = vld [vmem:[#allocation9 + $0x18] sm:$0xf]
    %v448 = vld [vmem:[#allocation9 + $0x1c] sm:$0xf]
    %v449 = vld [vmem:[#allocation9 + $0x20] sm:$0xf]
    %v450 = vld [vmem:[#allocation9 + $0x24] sm:$0xf]
    %v451 = vld [vmem:[#allocation9 + $0x28] sm:$0xf]
    %v452 = vld [vmem:[#allocation9 + $0x2c] sm:$0xf]
    %v453 = vld [vmem:[#allocation9 + $0x30] sm:$0xf]
    %v454 = vld [vmem:[#allocation9 + $0x34] sm:$0xf]
    %v455 = vld [vmem:[#allocation9 + $0x38] sm:$0xf]
    %v456 = vld [vmem:[#allocation9 + $0x3c] sm:$0xf]
    %v457 = vld [vmem:[%s12] sm:$0x1]
    %v458 = vlaneseq
    %v459 = vshrl.u32 %v458, 7
    %v460 = vsub.s32 0, %v459
    %v461 = vrot.slane %v457, %v460
    %v478 = vunpack.c.l.b16 %v441
    %v479 = vunpack.c.l.b16 %v442
    %v480 = vunpack.c.l.b16 %v443
    %v481 = vunpack.c.l.b16 %v444
    %v482 = vunpack.c.l.b16 %v445
    %v483 = vunpack.c.l.b16 %v446
    %v484 = vunpack.c.l.b16 %v447
    %v485 = vunpack.c.l.b16 %v448
    %v486 = vunpack.c.l.b16 %v449
    %v487 = vunpack.c.l.b16 %v450
    %v488 = vunpack.c.l.b16 %v451
    %v489 = vunpack.c.l.b16 %v452
    %v490 = vunpack.c.l.b16 %v453
    %v491 = vunpack.c.l.b16 %v454
    %v492 = vunpack.c.l.b16 %v455
    %v493 = vunpack.c.l.b16 %v456
    %v494 = vpack.c.b16 %v479, %v478
    %v495 = vpack.c.b16 %v481, %v480
    %v496 = vpack.c.b16 %v483, %v482
    %v497 = vpack.c.b16 %v485, %v484
    %v498 = vpack.c.b16 %v487, %v486
    %v499 = vpack.c.b16 %v489, %v488
    %v500 = vpack.c.b16 %v491, %v490
    %v501 = vpack.c.b16 %v493, %v492
    %510 = vmatprep.subr.bf16.mxu0 0
    %511 = vmatpush1.bf16.msra.mxu0 %v494
    %512 = vmatprep.subr.bf16.mxu0 0
    %513 = vmatpush1.bf16.msra.mxu0 %v495
    %514 = vmatprep.subr.bf16.mxu0 0
    %515 = vmatpush1.bf16.msra.mxu0 %v496
    %516 = vmatprep.subr.bf16.mxu0 0
    %517 = vmatpush1.bf16.msra.mxu0 %v497
    %518 = vmatprep.subr.bf16.mxu0 0
    %519 = vmatpush1.bf16.msra.mxu0 %v498
    %520 = vmatprep.subr.bf16.mxu0 0
    %521 = vmatpush1.bf16.msra.mxu0 %v499
    %522 = vmatprep.subr.bf16.mxu0 0
    %523 = vmatpush1.bf16.msra.mxu0 %v500
    %524 = vmatprep.subr.bf16.mxu0 0
    %525 = vmatpush1.bf16.msra.mxu0 %v501
    %526 = vmatprep.subr.bf16.mxu0 0
    %527 = vmatpush1.bf16.msra.mxu0 0
    %528 = vmatprep.subr.bf16.mxu0 0
    %529 = vmatpush1.bf16.msra.mxu0 0
    %530 = vmatprep.subr.bf16.mxu0 0
    %531 = vmatpush1.bf16.msra.mxu0 0
    %532 = vmatprep.subr.bf16.mxu0 0
    %533 = vmatpush1.bf16.msra.mxu0 0
    %534 = vmatprep.subr.bf16.mxu0 0
    %535 = vmatpush1.bf16.msra.mxu0 0
    %536 = vmatprep.subr.bf16.mxu0 0
    %537 = vmatpush1.bf16.msra.mxu0 0
    %538 = vmatprep.subr.bf16.mxu0 0
    %539 = vmatpush1.bf16.msra.mxu0 0
    %540 = vmatprep.subr.bf16.mxu0 0
    %541 = vmatpush1.bf16.msra.mxu0 0
    %542 = vmatprep.mubr.bf16.mxu0 0
    %543 = vmatmul.mubr.bf16.gmra.mrb[0].mxu0 %v433
    %v544 = vpop.f32.mrb[0].mxu0
    %v545 = vadd.f32 %v461, %v544
    %v546 = vpop.f32.mrb[0].mxu0
    %v547 = vpop.f32.mrb[0].mxu0
    %v548 = vadd.f32 %v461, %v547
    %v549 = vpop.f32.mrb[0].mxu0
    %550 = vmatprep.mubr.bf16.mxu0 0
    %551 = vmatmul.mubr.bf16.gmra.mrb[0].mxu0 %v434
    %v552 = vpop.f32.mrb[0].mxu0
    %v553 = vadd.f32 %v461, %v552
    %v554 = vpop.f32.mrb[0].mxu0
    %v555 = vpop.f32.mrb[0].mxu0
    %v556 = vadd.f32 %v461, %v555
    %v557 = vpop.f32.mrb[0].mxu0
    %558 = vmatprep.mubr.bf16.mxu0 0
    %559 = vmatmul.mubr.bf16.gmra.mrb[0].mxu0 %v435
    %v560 = vpop.f32.mrb[0].mxu0
    %v561 = vadd.f32 %v461, %v560
    %v562 = vpop.f32.mrb[0].mxu0
    %v563 = vpop.f32.mrb[0].mxu0
    %v564 = vadd.f32 %v461, %v563
    %v565 = vpop.f32.mrb[0].mxu0
    %566 = vmatprep.mubr.bf16.mxu0 0
    %567 = vmatmul.mubr.bf16.gmra.mrb[0].mxu0 %v436
    %v568 = vpop.f32.mrb[0].mxu0
    %v569 = vadd.f32 %v461, %v568
    %v570 = vpop.f32.mrb[0].mxu0
    %v571 = vpop.f32.mrb[0].mxu0
    %v572 = vadd.f32 %v461, %v571
    %v573 = vpop.f32.mrb[0].mxu0
    %574 = vmatprep.mubr.bf16.mxu0 0
    %575 = vmatmul.mubr.bf16.gmra.mrb[0].mxu0 %v437
    %v576 = vpop.f32.mrb[0].mxu0
    %v577 = vadd.f32 %v461, %v576
    %v578 = vpop.f32.mrb[0].mxu0
    %v579 = vpop.f32.mrb[0].mxu0
    %v580 = vadd.f32 %v461, %v579
    %v581 = vpop.f32.mrb[0].mxu0
    %582 = vmatprep.mubr.bf16.mxu0 0
    %583 = vmatmul.mubr.bf16.gmra.mrb[0].mxu0 %v438
    %v584 = vpop.f32.mrb[0].mxu0
    %v585 = vadd.f32 %v461, %v584
    %v586 = vpop.f32.mrb[0].mxu0
    %v587 = vpop.f32.mrb[0].mxu0
    %v588 = vadd.f32 %v461, %v587
    %v589 = vpop.f32.mrb[0].mxu0
    %590 = vmatprep.mubr.bf16.mxu0 0
    %591 = vmatmul.mubr.bf16.gmra.mrb[0].mxu0 %v439
    %v592 = vpop.f32.mrb[0].mxu0
    %v593 = vadd.f32 %v461, %v592
    %v594 = vpop.f32.mrb[0].mxu0
    %v595 = vpop.f32.mrb[0].mxu0
    %v596 = vadd.f32 %v461, %v595
    %v597 = vpop.f32.mrb[0].mxu0
    %598 = vmatprep.mubr.bf16.mxu0 0
    %599 = vmatmul.mubr.bf16.gmra.mrb[0].mxu0 %v440
    %v600 = vpop.f32.mrb[0].mxu0
    %v601 = vadd.f32 %v461, %v600
    %v602 = vpop.f32.mrb[0].mxu0
    %v603 = vpop.f32.mrb[0].mxu0
    %v604 = vadd.f32 %v461, %v603
    %v605 = vpop.f32.mrb[0].mxu0
    %606 = vdwg.mxu0
    %v607 = vmax.f32 %v545, 0.0
    %v608 = vmax.f32 %v548, 0.0
    %v609 = vmax.f32 %v553, 0.0
    %v610 = vmax.f32 %v556, 0.0
    %v611 = vmax.f32 %v561, 0.0
    %v612 = vmax.f32 %v564, 0.0
    %v613 = vmax.f32 %v569, 0.0
    %v614 = vmax.f32 %v572, 0.0
    %v615 = vmax.f32 %v577, 0.0
    %v616 = vmax.f32 %v580, 0.0
    %v617 = vmax.f32 %v585, 0.0
    %v618 = vmax.f32 %v588, 0.0
    %v619 = vmax.f32 %v593, 0.0
    %v620 = vmax.f32 %v596, 0.0
    %v621 = vmax.f32 %v601, 0.0
    %v622 = vmax.f32 %v604, 0.0
    %v623 = vpack.c.bf16 %v608, %v607
    %v624 = vpack.c.bf16 %v610, %v609
    %v625 = vpack.c.bf16 %v612, %v611
    %v626 = vpack.c.bf16 %v614, %v613
    %v627 = vpack.c.bf16 %v616, %v615
    %v628 = vpack.c.bf16 %v618, %v617
    %v629 = vpack.c.bf16 %v620, %v619
    %v630 = vpack.c.bf16 %v622, %v621
    %v631 = vld [vmem:[#allocation10] sm:$0xf]
    %v632 = vld [vmem:[#allocation10 + $0x4] sm:$0xf]
    %v633 = vld [vmem:[#allocation10 + $0x8] sm:$0xf]
    %v634 = vld [vmem:[#allocation10 + $0xc] sm:$0xf]
    %v635 = vld [vmem:[#allocation10 + $0x10] sm:$0xf]
    %v636 = vld [vmem:[#allocation10 + $0x14] sm:$0xf]
    %v637 = vld [vmem:[#allocation10 + $0x18] sm:$0xf]
    %v638 = vld [vmem:[#allocation10 + $0x1c] sm:$0xf]
    %v639 = vld [vmem:[#allocation10 + $0x20] sm:$0xf]
    %v640 = vld [vmem:[#allocation10 + $0x24] sm:$0xf]
    %v641 = vld [vmem:[#allocation10 + $0x28] sm:$0xf]
    %v642 = vld [vmem:[#allocation10 + $0x2c] sm:$0xf]
    %v643 = vld [vmem:[#allocation10 + $0x30] sm:$0xf]
    %v644 = vld [vmem:[#allocation10 + $0x34] sm:$0xf]
    %v645 = vld [vmem:[#allocation10 + $0x38] sm:$0xf]
    %v646 = vld [vmem:[#allocation10 + $0x3c] sm:$0xf]
    %v647 = vld [vmem:[%s12 + $0x1] sm:$0x1]
    %v648 = vlaneseq
    %v649 = vshrl.u32 %v648, 7
    %v650 = vsub.s32 0, %v649
    %v651 = vrot.slane %v647, %v650
    %v668 = vunpack.c.l.b16 %v631
    %v669 = vunpack.c.l.b16 %v632
    %v670 = vunpack.c.l.b16 %v633
    %v671 = vunpack.c.l.b16 %v634
    %v672 = vunpack.c.l.b16 %v635
    %v673 = vunpack.c.l.b16 %v636
    %v674 = vunpack.c.l.b16 %v637
    %v675 = vunpack.c.l.b16 %v638
    %v676 = vunpack.c.l.b16 %v639
    %v677 = vunpack.c.l.b16 %v640
    %v678 = vunpack.c.l.b16 %v641
    %v679 = vunpack.c.l.b16 %v642
    %v680 = vunpack.c.l.b16 %v643
    %v681 = vunpack.c.l.b16 %v644
    %v682 = vunpack.c.l.b16 %v645
    %v683 = vunpack.c.l.b16 %v646
    %v684 = vpack.c.b16 %v669, %v668
    %v685 = vpack.c.b16 %v671, %v670
    %v686 = vpack.c.b16 %v673, %v672
    %v687 = vpack.c.b16 %v675, %v674
    %v688 = vpack.c.b16 %v677, %v676
    %v689 = vpack.c.b16 %v679, %v678
    %v690 = vpack.c.b16 %v681, %v680
    %v691 = vpack.c.b16 %v683, %v682
    %700 = vmatprep.subr.bf16.mxu0 0
    %701 = vmatpush1.bf16.msra.mxu0 %v684
    %702 = vmatprep.subr.bf16.mxu0 0
    %703 = vmatpush1.bf16.msra.mxu0 %v685
    %704 = vmatprep.subr.bf16.mxu0 0
    %705 = vmatpush1.bf16.msra.mxu0 %v686
    %706 = vmatprep.subr.bf16.mxu0 0
    %707 = vmatpush1.bf16.msra.mxu0 %v687
    %708 = vmatprep.subr.bf16.mxu0 0
    %709 = vmatpush1.bf16.msra.mxu0 %v688
    %710 = vmatprep.subr.bf16.mxu0 0
    %711 = vmatpush1.bf16.msra.mxu0 %v689
    %712 = vmatprep.subr.bf16.mxu0 0
    %713 = vmatpush1.bf16.msra.mxu0 %v690
    %714 = vmatprep.subr.bf16.mxu0 0
    %715 = vmatpush1.bf16.msra.mxu0 %v691
    %716 = vmatprep.subr.bf16.mxu0 0
    %717 = vmatpush1.bf16.msra.mxu0 0
    %718 = vmatprep.subr.bf16.mxu0 0
    %719 = vmatpush1.bf16.msra.mxu0 0
    %720 = vmatprep.subr.bf16.mxu0 0
    %721 = vmatpush1.bf16.msra.mxu0 0
    %722 = vmatprep.subr.bf16.mxu0 0
    %723 = vmatpush1.bf16.msra.mxu0 0
    %724 = vmatprep.subr.bf16.mxu0 0
    %725 = vmatpush1.bf16.msra.mxu0 0
    %726 = vmatprep.subr.bf16.mxu0 0
    %727 = vmatpush1.bf16.msra.mxu0 0
    %728 = vmatprep.subr.bf16.mxu0 0
    %729 = vmatpush1.bf16.msra.mxu0 0
    %730 = vmatprep.subr.bf16.mxu0 0
    %731 = vmatpush1.bf16.msra.mxu0 0
    %732 = vmatprep.mubr.bf16.mxu0 0
    %733 = vmatmul.mubr.bf16.gmra.mrb[0].mxu0 %v623
    %v734 = vpop.f32.mrb[0].mxu0
    %v735 = vadd.f32 %v651, %v734
    %v736 = vpop.f32.mrb[0].mxu0
    %v737 = vpop.f32.mrb[0].mxu0
    %v738 = vadd.f32 %v651, %v737
    %v739 = vpop.f32.mrb[0].mxu0
    %740 = vmatprep.mubr.bf16.mxu0 0
    %741 = vmatmul.mubr.bf16.gmra.mrb[0].mxu0 %v624
    %v742 = vpop.f32.mrb[0].mxu0
    %v743 = vadd.f32 %v651, %v742
    %v744 = vpop.f32.mrb[0].mxu0
    %v745 = vpop.f32.mrb[0].mxu0
    %v746 = vadd.f32 %v651, %v745
    %v747 = vpop.f32.mrb[0].mxu0
    %748 = vmatprep.mubr.bf16.mxu0 0
    %749 = vmatmul.mubr.bf16.gmra.mrb[0].mxu0 %v625
    %v750 = vpop.f32.mrb[0].mxu0
    %v751 = vadd.f32 %v651, %v750
    %v752 = vpop.f32.mrb[0].mxu0
    %v753 = vpop.f32.mrb[0].mxu0
    %v754 = vadd.f32 %v651, %v753
    %v755 = vpop.f32.mrb[0].mxu0
    %756 = vmatprep.mubr.bf16.mxu0 0
    %757 = vmatmul.mubr.bf16.gmra.mrb[0].mxu0 %v626
    %v758 = vpop.f32.mrb[0].mxu0
    %v759 = vadd.f32 %v651, %v758
    %v760 = vpop.f32.mrb[0].mxu0
    %v761 = vpop.f32.mrb[0].mxu0
    %v762 = vadd.f32 %v651, %v761
    %v763 = vpop.f32.mrb[0].mxu0
    %764 = vmatprep.mubr.bf16.mxu0 0
    %765 = vmatmul.mubr.bf16.gmra.mrb[0].mxu0 %v627
    %v766 = vpop.f32.mrb[0].mxu0
    %v767 = vadd.f32 %v651, %v766
    %v768 = vpop.f32.mrb[0].mxu0
    %v769 = vpop.f32.mrb[0].mxu0
    %v770 = vadd.f32 %v651, %v769
    %v771 = vpop.f32.mrb[0].mxu0
    %772 = vmatprep.mubr.bf16.mxu0 0
    %773 = vmatmul.mubr.bf16.gmra.mrb[0].mxu0 %v628
    %v774 = vpop.f32.mrb[0].mxu0
    %v775 = vadd.f32 %v651, %v774
    %v776 = vpop.f32.mrb[0].mxu0
    %v777 = vpop.f32.mrb[0].mxu0
    %v778 = vadd.f32 %v651, %v777
    %v779 = vpop.f32.mrb[0].mxu0
    %780 = vmatprep.mubr.bf16.mxu0 0
    %781 = vmatmul.mubr.bf16.gmra.mrb[0].mxu0 %v629
    %v782 = vpop.f32.mrb[0].mxu0
    %v783 = vadd.f32 %v651, %v782
    %v784 = vpop.f32.mrb[0].mxu0
    %v785 = vpop.f32.mrb[0].mxu0
    %v786 = vadd.f32 %v651, %v785
    %v787 = vpop.f32.mrb[0].mxu0
    %788 = vmatprep.mubr.bf16.mxu0 0
    %789 = vmatmul.mubr.bf16.gmra.mrb[0].mxu0 %v630
    %v790 = vpop.f32.mrb[0].mxu0
    %v791 = vadd.f32 %v651, %v790
    %v792 = vpop.f32.mrb[0].mxu0
    %v793 = vpop.f32.mrb[0].mxu0
    %v794 = vadd.f32 %v651, %v793
    %v795 = vpop.f32.mrb[0].mxu0
    %796 = vdwg.mxu0
    %v797 = vmax.f32 %v735, 0.0
    %v798 = vmax.f32 %v738, 0.0
    %v799 = vmax.f32 %v743, 0.0
    %v800 = vmax.f32 %v746, 0.0
    %v801 = vmax.f32 %v751, 0.0
    %v802 = vmax.f32 %v754, 0.0
    %v803 = vmax.f32 %v759, 0.0
    %v804 = vmax.f32 %v762, 0.0
    %v805 = vmax.f32 %v767, 0.0
    %v806 = vmax.f32 %v770, 0.0
    %v807 = vmax.f32 %v775, 0.0
    %v808 = vmax.f32 %v778, 0.0
    %v809 = vmax.f32 %v783, 0.0
    %v810 = vmax.f32 %v786, 0.0
    %v811 = vmax.f32 %v791, 0.0
    %v812 = vmax.f32 %v794, 0.0
    %v813 = vpack.c.bf16 %v798, %v797
    %v814 = vpack.c.bf16 %v800, %v799
    %v815 = vpack.c.bf16 %v802, %v801
    %v816 = vpack.c.bf16 %v804, %v803
    %v817 = vpack.c.bf16 %v806, %v805
    %v818 = vpack.c.bf16 %v808, %v807
    %v819 = vpack.c.bf16 %v810, %v809
    %v820 = vpack.c.bf16 %v812, %v811
    %v821 = vld [vmem:[#allocation4] sm:$0xf]
    %v822 = vld [vmem:[#allocation4 + $0x4] sm:$0xf]
    %v823 = vld [vmem:[#allocation4 + $0x8] sm:$0xf]
    %v824 = vld [vmem:[#allocation4 + $0xc] sm:$0xf]
    %v825 = vld [vmem:[#allocation4 + $0x10] sm:$0xf]
    %v826 = vld [vmem:[#allocation4 + $0x14] sm:$0xf]
    %v827 = vld [vmem:[#allocation4 + $0x18] sm:$0xf]
    %v828 = vld [vmem:[#allocation4 + $0x1c] sm:$0xf]
    %v829 = vld [vmem:[#allocation4 + $0x20] sm:$0xf]
    %v830 = vld [vmem:[#allocation4 + $0x24] sm:$0xf]
    %v831 = vld [vmem:[#allocation4 + $0x28] sm:$0xf]
    %v832 = vld [vmem:[#allocation4 + $0x2c] sm:$0xf]
    %v833 = vld [vmem:[#allocation4 + $0x30] sm:$0xf]
    %v834 = vld [vmem:[#allocation4 + $0x34] sm:$0xf]
    %v835 = vld [vmem:[#allocation4 + $0x38] sm:$0xf]
    %v836 = vld [vmem:[#allocation4 + $0x3c] sm:$0xf]
    %v853 = vunpack.c.l.b16 %v821
    %v854 = vunpack.c.l.b16 %v822
    %v855 = vunpack.c.l.b16 %v823
    %v856 = vunpack.c.l.b16 %v824
    %v857 = vunpack.c.l.b16 %v825
    %v858 = vunpack.c.l.b16 %v826
    %v859 = vunpack.c.l.b16 %v827
    %v860 = vunpack.c.l.b16 %v828
    %v861 = vunpack.c.l.b16 %v829
    %v862 = vunpack.c.l.b16 %v830
    %v863 = vunpack.c.l.b16 %v831
    %v864 = vunpack.c.l.b16 %v832
    %v865 = vunpack.c.l.b16 %v833
    %v866 = vunpack.c.l.b16 %v834
    %v867 = vunpack.c.l.b16 %v835
    %v868 = vunpack.c.l.b16 %v836
    %v869 = vpack.c.b16 %v854, %v853
    %v870 = vpack.c.b16 %v856, %v855
    %v871 = vpack.c.b16 %v858, %v857
    %v872 = vpack.c.b16 %v860, %v859
    %v873 = vpack.c.b16 %v862, %v861
    %v874 = vpack.c.b16 %v864, %v863
    %v875 = vpack.c.b16 %v866, %v865
    %v876 = vpack.c.b16 %v868, %v867
    %885 = vmatprep.subr.bf16.mxu0 0
    %886 = vmatpush1.bf16.msra.mxu0 %v813
    %887 = vmatprep.subr.bf16.mxu0 0
    %888 = vmatpush1.bf16.msra.mxu0 %v814
    %889 = vmatprep.subr.bf16.mxu0 0
    %890 = vmatpush1.bf16.msra.mxu0 %v815
    %891 = vmatprep.subr.bf16.mxu0 0
    %892 = vmatpush1.bf16.msra.mxu0 %v816
    %893 = vmatprep.subr.bf16.mxu0 0
    %894 = vmatpush1.bf16.msra.mxu0 %v817
    %895 = vmatprep.subr.bf16.mxu0 0
    %896 = vmatpush1.bf16.msra.mxu0 %v818
    %897 = vmatprep.subr.bf16.mxu0 0
    %898 = vmatpush1.bf16.msra.mxu0 %v819
    %899 = vmatprep.subr.bf16.mxu0 0
    %900 = vmatpush1.bf16.msra.mxu0 %v820
    %901 = vmatprep.subr.bf16.mxu0 0
    %902 = vmatpush1.bf16.msra.mxu0 0
    %903 = vmatprep.subr.bf16.mxu0 0
    %904 = vmatpush1.bf16.msra.mxu0 0
    %905 = vmatprep.subr.bf16.mxu0 0
    %906 = vmatpush1.bf16.msra.mxu0 0
    %907 = vmatprep.subr.bf16.mxu0 0
    %908 = vmatpush1.bf16.msra.mxu0 0
    %909 = vmatprep.subr.bf16.mxu0 0
    %910 = vmatpush1.bf16.msra.mxu0 0
    %911 = vmatprep.subr.bf16.mxu0 0
    %912 = vmatpush1.bf16.msra.mxu0 0
    %913 = vmatprep.subr.bf16.mxu0 0
    %914 = vmatpush1.bf16.msra.mxu0 0
    %915 = vmatprep.subr.bf16.mxu0 0
    %916 = vmatpush1.bf16.msra.mxu0 0
    %917 = vmatprep.mubr.bf16.mxu0 0
    %918 = vmatmul.mubr.bf16.gmra.mrb[0].mxu0 %v869
    %v919 = vpop.f32.mrb[0].mxu0
    %v920 = vadd.f32 0.0, %v919
    %v921 = vpop.f32.mrb[0].mxu0
    %v922 = vpop.f32.mrb[0].mxu0
    %v923 = vadd.f32 0.0, %v922
    %v924 = vpop.f32.mrb[0].mxu0
    %925 = vmatprep.mubr.bf16.mxu0 0
    %926 = vmatmul.mubr.bf16.gmra.mrb[0].mxu0 %v870
    %v927 = vpop.f32.mrb[0].mxu0
    %v928 = vadd.f32 0.0, %v927
    %v929 = vpop.f32.mrb[0].mxu0
    %v930 = vpop.f32.mrb[0].mxu0
    %v931 = vadd.f32 0.0, %v930
    %v932 = vpop.f32.mrb[0].mxu0
    %933 = vmatprep.mubr.bf16.mxu0 0
    %934 = vmatmul.mubr.bf16.gmra.mrb[0].mxu0 %v871
    %v935 = vpop.f32.mrb[0].mxu0
    %v936 = vadd.f32 0.0, %v935
    %v937 = vpop.f32.mrb[0].mxu0
    %v938 = vpop.f32.mrb[0].mxu0
    %v939 = vadd.f32 0.0, %v938
    %v940 = vpop.f32.mrb[0].mxu0
    %941 = vmatprep.mubr.bf16.mxu0 0
    %942 = vmatmul.mubr.bf16.gmra.mrb[0].mxu0 %v872
    %v943 = vpop.f32.mrb[0].mxu0
    %v944 = vadd.f32 0.0, %v943
    %v945 = vpop.f32.mrb[0].mxu0
    %v946 = vpop.f32.mrb[0].mxu0
    %v947 = vadd.f32 0.0, %v946
    %v948 = vpop.f32.mrb[0].mxu0
    %949 = vmatprep.mubr.bf16.mxu0 0
    %950 = vmatmul.mubr.bf16.gmra.mrb[0].mxu0 %v873
    %v951 = vpop.f32.mrb[0].mxu0
    %v952 = vadd.f32 0.0, %v951
    %v953 = vpop.f32.mrb[0].mxu0
    %v954 = vpop.f32.mrb[0].mxu0
    %v955 = vadd.f32 0.0, %v954
    %v956 = vpop.f32.mrb[0].mxu0
    %957 = vmatprep.mubr.bf16.mxu0 0
    %958 = vmatmul.mubr.bf16.gmra.mrb[0].mxu0 %v874
    %v959 = vpop.f32.mrb[0].mxu0
    %v960 = vadd.f32 0.0, %v959
    %v961 = vpop.f32.mrb[0].mxu0
    %v962 = vpop.f32.mrb[0].mxu0
    %v963 = vadd.f32 0.0, %v962
    %v964 = vpop.f32.mrb[0].mxu0
    %965 = vmatprep.mubr.bf16.mxu0 0
    %966 = vmatmul.mubr.bf16.gmra.mrb[0].mxu0 %v875
    %v967 = vpop.f32.mrb[0].mxu0
    %v968 = vadd.f32 0.0, %v967
    %v969 = vpop.f32.mrb[0].mxu0
    %v970 = vpop.f32.mrb[0].mxu0
    %v971 = vadd.f32 0.0, %v970
    %v972 = vpop.f32.mrb[0].mxu0
    %973 = vmatprep.mubr.bf16.mxu0 0
    %974 = vmatmul.mubr.bf16.gmra.mrb[0].mxu0 %v876
    %v975 = vpop.f32.mrb[0].mxu0
    %v976 = vadd.f32 0.0, %v975
    %v977 = vpop.f32.mrb[0].mxu0
    %v978 = vpop.f32.mrb[0].mxu0
    %v979 = vadd.f32 0.0, %v978
    %v980 = vpop.f32.mrb[0].mxu0
    %981 = vdwg.mxu0
    %v982 = vpack.c.bf16 %v923, %v920
    %v983 = vpack.c.bf16 %v931, %v928
    %v984 = vpack.c.bf16 %v939, %v936
    %v985 = vpack.c.bf16 %v947, %v944
    %v986 = vpack.c.bf16 %v955, %v952
    %v987 = vpack.c.bf16 %v963, %v960
    %v988 = vpack.c.bf16 %v971, %v968
    %v989 = vpack.c.bf16 %v979, %v976
    %v990 = vld [vmem:[#allocation12] sm:$0xf]
    %v991 = vld [vmem:[#allocation12 + $0x4] sm:$0xf]
    %v992 = vld [vmem:[#allocation12 + $0x8] sm:$0xf]
    %v993 = vld [vmem:[#allocation12 + $0xc] sm:$0xf]
    %v994 = vld [vmem:[#allocation12 + $0x10] sm:$0xf]
    %v995 = vld [vmem:[#allocation12 + $0x14] sm:$0xf]
    %v996 = vld [vmem:[#allocation12 + $0x18] sm:$0xf]
    %v997 = vld [vmem:[#allocation12 + $0x1c] sm:$0xf]
    %v998 = vld [vmem:[#allocation12 + $0x20] sm:$0xf]
    %v999 = vld [vmem:[#allocation12 + $0x24] sm:$0xf]
    %v1000 = vld [vmem:[#allocation12 + $0x28] sm:$0xf]
    %v1001 = vld [vmem:[#allocation12 + $0x2c] sm:$0xf]
    %v1002 = vld [vmem:[#allocation12 + $0x30] sm:$0xf]
    %v1003 = vld [vmem:[#allocation12 + $0x34] sm:$0xf]
    %v1004 = vld [vmem:[#allocation12 + $0x38] sm:$0xf]
    %v1005 = vld [vmem:[#allocation12 + $0x3c] sm:$0xf]
    %v1006 = vld [vmem:[%s12 + $0x2] sm:$0x1]
    %v1007 = vlaneseq
    %v1008 = vshrl.u32 %v1007, 7
    %v1009 = vsub.s32 0, %v1008
    %v1010 = vrot.slane %v1006, %v1009
    %v1027 = vunpack.c.l.b16 %v990
    %v1028 = vunpack.c.l.b16 %v991
    %v1029 = vunpack.c.l.b16 %v992
    %v1030 = vunpack.c.l.b16 %v993
    %v1031 = vunpack.c.l.b16 %v994
    %v1032 = vunpack.c.l.b16 %v995
    %v1033 = vunpack.c.l.b16 %v996
    %v1034 = vunpack.c.l.b16 %v997
    %v1035 = vunpack.c.l.b16 %v998
    %v1036 = vunpack.c.l.b16 %v999
    %v1037 = vunpack.c.l.b16 %v1000
    %v1038 = vunpack.c.l.b16 %v1001
    %v1039 = vunpack.c.l.b16 %v1002
    %v1040 = vunpack.c.l.b16 %v1003
    %v1041 = vunpack.c.l.b16 %v1004
    %v1042 = vunpack.c.l.b16 %v1005
    %v1043 = vpack.c.b16 %v1028, %v1027
    %v1044 = vpack.c.b16 %v1030, %v1029
    %v1045 = vpack.c.b16 %v1032, %v1031
    %v1046 = vpack.c.b16 %v1034, %v1033
    %v1047 = vpack.c.b16 %v1036, %v1035
    %v1048 = vpack.c.b16 %v1038, %v1037
    %v1049 = vpack.c.b16 %v1040, %v1039
    %v1050 = vpack.c.b16 %v1042, %v1041
    %1059 = vmatprep.subr.bf16.mxu0 0
    %1060 = vmatpush1.bf16.msra.mxu0 %v1043
    %1061 = vmatprep.subr.bf16.mxu0 0
    %1062 = vmatpush1.bf16.msra.mxu0 %v1044
    %1063 = vmatprep.subr.bf16.mxu0 0
    %1064 = vmatpush1.bf16.msra.mxu0 %v1045
    %1065 = vmatprep.subr.bf16.mxu0 0
    %1066 = vmatpush1.bf16.msra.mxu0 %v1046
    %1067 = vmatprep.subr.bf16.mxu0 0
    %1068 = vmatpush1.bf16.msra.mxu0 %v1047
    %1069 = vmatprep.subr.bf16.mxu0 0
    %1070 = vmatpush1.bf16.msra.mxu0 %v1048
    %1071 = vmatprep.subr.bf16.mxu0 0
    %1072 = vmatpush1.bf16.msra.mxu0 %v1049
    %1073 = vmatprep.subr.bf16.mxu0 0
    %1074 = vmatpush1.bf16.msra.mxu0 %v1050
    %1075 = vmatprep.subr.bf16.mxu0 0
    %1076 = vmatpush1.bf16.msra.mxu0 0
    %1077 = vmatprep.subr.bf16.mxu0 0
    %1078 = vmatpush1.bf16.msra.mxu0 0
    %1079 = vmatprep.subr.bf16.mxu0 0
    %1080 = vmatpush1.bf16.msra.mxu0 0
    %1081 = vmatprep.subr.bf16.mxu0 0
    %1082 = vmatpush1.bf16.msra.mxu0 0
    %1083 = vmatprep.subr.bf16.mxu0 0
    %1084 = vmatpush1.bf16.msra.mxu0 0
    %1085 = vmatprep.subr.bf16.mxu0 0
    %1086 = vmatpush1.bf16.msra.mxu0 0
    %1087 = vmatprep.subr.bf16.mxu0 0
    %1088 = vmatpush1.bf16.msra.mxu0 0
    %1089 = vmatprep.subr.bf16.mxu0 0
    %1090 = vmatpush1.bf16.msra.mxu0 0
    %1091 = vmatprep.mubr.bf16.mxu0 0
    %1092 = vmatmul.mubr.bf16.gmra.mrb[0].mxu0 %v982
    %v1093 = vpop.f32.mrb[0].mxu0
    %v1094 = vadd.f32 %v1010, %v1093
    %v1095 = vpop.f32.mrb[0].mxu0
    %v1096 = vpop.f32.mrb[0].mxu0
    %v1097 = vadd.f32 %v1010, %v1096
    %v1098 = vpop.f32.mrb[0].mxu0
    %1099 = vmatprep.mubr.bf16.mxu0 0
    %1100 = vmatmul.mubr.bf16.gmra.mrb[0].mxu0 %v983
    %v1101 = vpop.f32.mrb[0].mxu0
    %v1102 = vadd.f32 %v1010, %v1101
    %v1103 = vpop.f32.mrb[0].mxu0
    %v1104 = vpop.f32.mrb[0].mxu0
    %v1105 = vadd.f32 %v1010, %v1104
    %v1106 = vpop.f32.mrb[0].mxu0
    %1107 = vmatprep.mubr.bf16.mxu0 0
    %1108 = vmatmul.mubr.bf16.gmra.mrb[0].mxu0 %v984
    %v1109 = vpop.f32.mrb[0].mxu0
    %v1110 = vadd.f32 %v1010, %v1109
    %v1111 = vpop.f32.mrb[0].mxu0
    %v1112 = vpop.f32.mrb[0].mxu0
    %v1113 = vadd.f32 %v1010, %v1112
    %v1114 = vpop.f32.mrb[0].mxu0
    %1115 = vmatprep.mubr.bf16.mxu0 0
    %1116 = vmatmul.mubr.bf16.gmra.mrb[0].mxu0 %v985
    %v1117 = vpop.f32.mrb[0].mxu0
    %v1118 = vadd.f32 %v1010, %v1117
    %v1119 = vpop.f32.mrb[0].mxu0
    %v1120 = vpop.f32.mrb[0].mxu0
    %v1121 = vadd.f32 %v1010, %v1120
    %v1122 = vpop.f32.mrb[0].mxu0
    %1123 = vmatprep.mubr.bf16.mxu0 0
    %1124 = vmatmul.mubr.bf16.gmra.mrb[0].mxu0 %v986
    %v1125 = vpop.f32.mrb[0].mxu0
    %v1126 = vadd.f32 %v1010, %v1125
    %v1127 = vpop.f32.mrb[0].mxu0
    %v1128 = vpop.f32.mrb[0].mxu0
    %v1129 = vadd.f32 %v1010, %v1128
    %v1130 = vpop.f32.mrb[0].mxu0
    %1131 = vmatprep.mubr.bf16.mxu0 0
    %1132 = vmatmul.mubr.bf16.gmra.mrb[0].mxu0 %v987
    %v1133 = vpop.f32.mrb[0].mxu0
    %v1134 = vadd.f32 %v1010, %v1133
    %v1135 = vpop.f32.mrb[0].mxu0
    %v1136 = vpop.f32.mrb[0].mxu0
    %v1137 = vadd.f32 %v1010, %v1136
    %v1138 = vpop.f32.mrb[0].mxu0
    %1139 = vmatprep.mubr.bf16.mxu0 0
    %1140 = vmatmul.mubr.bf16.gmra.mrb[0].mxu0 %v988
    %v1141 = vpop.f32.mrb[0].mxu0
    %v1142 = vadd.f32 %v1010, %v1141
    %v1143 = vpop.f32.mrb[0].mxu0
    %v1144 = vpop.f32.mrb[0].mxu0
    %v1145 = vadd.f32 %v1010, %v1144
    %v1146 = vpop.f32.mrb[0].mxu0
    %1147 = vmatprep.mubr.bf16.mxu0 0
    %1148 = vmatmul.mubr.bf16.gmra.mrb[0].mxu0 %v989
    %v1149 = vpop.f32.mrb[0].mxu0
    %v1150 = vadd.f32 %v1010, %v1149
    %v1151 = vpop.f32.mrb[0].mxu0
    %v1152 = vpop.f32.mrb[0].mxu0
    %v1153 = vadd.f32 %v1010, %v1152
    %v1154 = vpop.f32.mrb[0].mxu0
    %1155 = vdwg.mxu0
    %v1156 = vmax.f32 %v1094, 0.0
    %v1157 = vmax.f32 %v1097, 0.0
    %v1158 = vmax.f32 %v1102, 0.0
    %v1159 = vmax.f32 %v1105, 0.0
    %v1160 = vmax.f32 %v1110, 0.0
    %v1161 = vmax.f32 %v1113, 0.0
    %v1162 = vmax.f32 %v1118, 0.0
    %v1163 = vmax.f32 %v1121, 0.0
    %v1164 = vmax.f32 %v1126, 0.0
    %v1165 = vmax.f32 %v1129, 0.0
    %v1166 = vmax.f32 %v1134, 0.0
    %v1167 = vmax.f32 %v1137, 0.0
    %v1168 = vmax.f32 %v1142, 0.0
    %v1169 = vmax.f32 %v1145, 0.0
    %v1170 = vmax.f32 %v1150, 0.0
    %v1171 = vmax.f32 %v1153, 0.0
    %v1172 = vpack.c.bf16 %v1157, %v1156
    %v1173 = vpack.c.bf16 %v1159, %v1158
    %v1174 = vpack.c.bf16 %v1161, %v1160
    %v1175 = vpack.c.bf16 %v1163, %v1162
    %v1176 = vpack.c.bf16 %v1165, %v1164
    %v1177 = vpack.c.bf16 %v1167, %v1166
    %v1178 = vpack.c.bf16 %v1169, %v1168
    %v1179 = vpack.c.bf16 %v1171, %v1170
    %v1180 = vld [vmem:[#allocation13] sm:$0xf]
    %v1181 = vld [vmem:[#allocation13 + $0x4] sm:$0xf]
    %v1182 = vld [vmem:[#allocation13 + $0x8] sm:$0xf]
    %v1183 = vld [vmem:[#allocation13 + $0xc] sm:$0xf]
    %v1184 = vld [vmem:[#allocation13 + $0x10] sm:$0xf]
    %v1185 = vld [vmem:[#allocation13 + $0x14] sm:$0xf]
    %v1186 = vld [vmem:[#allocation13 + $0x18] sm:$0xf]
    %v1187 = vld [vmem:[#allocation13 + $0x1c] sm:$0xf]
    %v1188 = vld [vmem:[#allocation13 + $0x20] sm:$0xf]
    %v1189 = vld [vmem:[#allocation13 + $0x24] sm:$0xf]
    %v1190 = vld [vmem:[#allocation13 + $0x28] sm:$0xf]
    %v1191 = vld [vmem:[#allocation13 + $0x2c] sm:$0xf]
    %v1192 = vld [vmem:[#allocation13 + $0x30] sm:$0xf]
    %v1193 = vld [vmem:[#allocation13 + $0x34] sm:$0xf]
    %v1194 = vld [vmem:[#allocation13 + $0x38] sm:$0xf]
    %v1195 = vld [vmem:[#allocation13 + $0x3c] sm:$0xf]
    %v1196 = vld [vmem:[%s12 + $0x3] sm:$0x1]
    %v1197 = vlaneseq
    %v1198 = vshrl.u32 %v1197, 7
    %v1199 = vsub.s32 0, %v1198
    %v1200 = vrot.slane %v1196, %v1199
    %v1217 = vunpack.c.l.b16 %v1180
    %v1218 = vunpack.c.l.b16 %v1181
    %v1219 = vunpack.c.l.b16 %v1182
    %v1220 = vunpack.c.l.b16 %v1183
    %v1221 = vunpack.c.l.b16 %v1184
    %v1222 = vunpack.c.l.b16 %v1185
    %v1223 = vunpack.c.l.b16 %v1186
    %v1224 = vunpack.c.l.b16 %v1187
    %v1225 = vunpack.c.l.b16 %v1188
    %v1226 = vunpack.c.l.b16 %v1189
    %v1227 = vunpack.c.l.b16 %v1190
    %v1228 = vunpack.c.l.b16 %v1191
    %v1229 = vunpack.c.l.b16 %v1192
    %v1230 = vunpack.c.l.b16 %v1193
    %v1231 = vunpack.c.l.b16 %v1194
    %v1232 = vunpack.c.l.b16 %v1195
    %v1233 = vpack.c.b16 %v1218, %v1217
    %v1234 = vpack.c.b16 %v1220, %v1219
    %v1235 = vpack.c.b16 %v1222, %v1221
    %v1236 = vpack.c.b16 %v1224, %v1223
    %v1237 = vpack.c.b16 %v1226, %v1225
    %v1238 = vpack.c.b16 %v1228, %v1227
    %v1239 = vpack.c.b16 %v1230, %v1229
    %v1240 = vpack.c.b16 %v1232, %v1231
    %1249 = vmatprep.subr.bf16.mxu0 0
    %1250 = vmatpush1.bf16.msra.mxu0 %v1233
    %1251 = vmatprep.subr.bf16.mxu0 0
    %1252 = vmatpush1.bf16.msra.mxu0 %v1234
    %1253 = vmatprep.subr.bf16.mxu0 0
    %1254 = vmatpush1.bf16.msra.mxu0 %v1235
    %1255 = vmatprep.subr.bf16.mxu0 0
    %1256 = vmatpush1.bf16.msra.mxu0 %v1236
    %1257 = vmatprep.subr.bf16.mxu0 0
    %1258 = vmatpush1.bf16.msra.mxu0 %v1237
    %1259 = vmatprep.subr.bf16.mxu0 0
    %1260 = vmatpush1.bf16.msra.mxu0 %v1238
    %1261 = vmatprep.subr.bf16.mxu0 0
    %1262 = vmatpush1.bf16.msra.mxu0 %v1239
    %1263 = vmatprep.subr.bf16.mxu0 0
    %1264 = vmatpush1.bf16.msra.mxu0 %v1240
    %1265 = vmatprep.subr.bf16.mxu0 0
    %1266 = vmatpush1.bf16.msra.mxu0 0
    %1267 = vmatprep.subr.bf16.mxu0 0
    %1268 = vmatpush1.bf16.msra.mxu0 0
    %1269 = vmatprep.subr.bf16.mxu0 0
    %1270 = vmatpush1.bf16.msra.mxu0 0
    %1271 = vmatprep.subr.bf16.mxu0 0
    %1272 = vmatpush1.bf16.msra.mxu0 0
    %1273 = vmatprep.subr.bf16.mxu0 0
    %1274 = vmatpush1.bf16.msra.mxu0 0
    %1275 = vmatprep.subr.bf16.mxu0 0
    %1276 = vmatpush1.bf16.msra.mxu0 0
    %1277 = vmatprep.subr.bf16.mxu0 0
    %1278 = vmatpush1.bf16.msra.mxu0 0
    %1279 = vmatprep.subr.bf16.mxu0 0
    %1280 = vmatpush1.bf16.msra.mxu0 0
    %1281 = vmatprep.mubr.bf16.mxu0 0
    %1282 = vmatmul.mubr.bf16.gmra.mrb[0].mxu0 %v1172
    %v1283 = vpop.f32.mrb[0].mxu0
    %v1284 = vadd.f32 %v1200, %v1283
    %v1285 = vpop.f32.mrb[0].mxu0
    %v1286 = vpop.f32.mrb[0].mxu0
    %v1287 = vadd.f32 %v1200, %v1286
    %v1288 = vpop.f32.mrb[0].mxu0
    %1289 = vmatprep.mubr.bf16.mxu0 0
    %1290 = vmatmul.mubr.bf16.gmra.mrb[0].mxu0 %v1173
    %v1291 = vpop.f32.mrb[0].mxu0
    %v1292 = vadd.f32 %v1200, %v1291
    %v1293 = vpop.f32.mrb[0].mxu0
    %v1294 = vpop.f32.mrb[0].mxu0
    %v1295 = vadd.f32 %v1200, %v1294
    %v1296 = vpop.f32.mrb[0].mxu0
    %1297 = vmatprep.mubr.bf16.mxu0 0
    %1298 = vmatmul.mubr.bf16.gmra.mrb[0].mxu0 %v1174
    %v1299 = vpop.f32.mrb[0].mxu0
    %v1300 = vadd.f32 %v1200, %v1299
    %v1301 = vpop.f32.mrb[0].mxu0
    %v1302 = vpop.f32.mrb[0].mxu0
    %v1303 = vadd.f32 %v1200, %v1302
    %v1304 = vpop.f32.mrb[0].mxu0
    %1305 = vmatprep.mubr.bf16.mxu0 0
    %1306 = vmatmul.mubr.bf16.gmra.mrb[0].mxu0 %v1175
    %v1307 = vpop.f32.mrb[0].mxu0
    %v1308 = vadd.f32 %v1200, %v1307
    %v1309 = vpop.f32.mrb[0].mxu0
    %v1310 = vpop.f32.mrb[0].mxu0
    %v1311 = vadd.f32 %v1200, %v1310
    %v1312 = vpop.f32.mrb[0].mxu0
    %1313 = vmatprep.mubr.bf16.mxu0 0
    %1314 = vmatmul.mubr.bf16.gmra.mrb[0].mxu0 %v1176
    %v1315 = vpop.f32.mrb[0].mxu0
    %v1316 = vadd.f32 %v1200, %v1315
    %v1317 = vpop.f32.mrb[0].mxu0
    %v1318 = vpop.f32.mrb[0].mxu0
    %v1319 = vadd.f32 %v1200, %v1318
    %v1320 = vpop.f32.mrb[0].mxu0
    %1321 = vmatprep.mubr.bf16.mxu0 0
    %1322 = vmatmul.mubr.bf16.gmra.mrb[0].mxu0 %v1177
    %v1323 = vpop.f32.mrb[0].mxu0
    %v1324 = vadd.f32 %v1200, %v1323
    %v1325 = vpop.f32.mrb[0].mxu0
    %v1326 = vpop.f32.mrb[0].mxu0
    %v1327 = vadd.f32 %v1200, %v1326
    %v1328 = vpop.f32.mrb[0].mxu0
    %1329 = vmatprep.mubr.bf16.mxu0 0
    %1330 = vmatmul.mubr.bf16.gmra.mrb[0].mxu0 %v1178
    %v1331 = vpop.f32.mrb[0].mxu0
    %v1332 = vadd.f32 %v1200, %v1331
    %v1333 = vpop.f32.mrb[0].mxu0
    %v1334 = vpop.f32.mrb[0].mxu0
    %v1335 = vadd.f32 %v1200, %v1334
    %v1336 = vpop.f32.mrb[0].mxu0
    %1337 = vmatprep.mubr.bf16.mxu0 0
    %1338 = vmatmul.mubr.bf16.gmra.mrb[0].mxu0 %v1179
    %v1339 = vpop.f32.mrb[0].mxu0
    %v1340 = vadd.f32 %v1200, %v1339
    %v1341 = vpop.f32.mrb[0].mxu0
    %v1342 = vpop.f32.mrb[0].mxu0
    %v1343 = vadd.f32 %v1200, %v1342
    %v1344 = vpop.f32.mrb[0].mxu0
    %1345 = vdwg.mxu0
    %v1346 = vmax.f32 %v1284, 0.0
    %v1347 = vmax.f32 %v1287, 0.0
    %v1348 = vmax.f32 %v1292, 0.0
    %v1349 = vmax.f32 %v1295, 0.0
    %v1350 = vmax.f32 %v1300, 0.0
    %v1351 = vmax.f32 %v1303, 0.0
    %v1352 = vmax.f32 %v1308, 0.0
    %v1353 = vmax.f32 %v1311, 0.0
    %v1354 = vmax.f32 %v1316, 0.0
    %v1355 = vmax.f32 %v1319, 0.0
    %v1356 = vmax.f32 %v1324, 0.0
    %v1357 = vmax.f32 %v1327, 0.0
    %v1358 = vmax.f32 %v1332, 0.0
    %v1359 = vmax.f32 %v1335, 0.0
    %v1360 = vmax.f32 %v1340, 0.0
    %v1361 = vmax.f32 %v1343, 0.0
    %v1362 = vpack.c.bf16 %v1347, %v1346
    %v1363 = vpack.c.bf16 %v1349, %v1348
    %v1364 = vpack.c.bf16 %v1351, %v1350
    %v1365 = vpack.c.bf16 %v1353, %v1352
    %v1366 = vpack.c.bf16 %v1355, %v1354
    %v1367 = vpack.c.bf16 %v1357, %v1356
    %v1368 = vpack.c.bf16 %v1359, %v1358
    %v1369 = vpack.c.bf16 %v1361, %v1360
    %v1370 = vld [vmem:[#allocation6] sm:$0xf]
    %v1371 = vld [vmem:[#allocation6 + $0x4] sm:$0xf]
    %v1372 = vld [vmem:[#allocation6 + $0x8] sm:$0xf]
    %v1373 = vld [vmem:[#allocation6 + $0xc] sm:$0xf]
    %v1374 = vld [vmem:[#allocation6 + $0x10] sm:$0xf]
    %v1375 = vld [vmem:[#allocation6 + $0x14] sm:$0xf]
    %v1376 = vld [vmem:[#allocation6 + $0x18] sm:$0xf]
    %v1377 = vld [vmem:[#allocation6 + $0x1c] sm:$0xf]
    %v1378 = vld [vmem:[#allocation6 + $0x20] sm:$0xf]
    %v1379 = vld [vmem:[#allocation6 + $0x24] sm:$0xf]
    %v1380 = vld [vmem:[#allocation6 + $0x28] sm:$0xf]
    %v1381 = vld [vmem:[#allocation6 + $0x2c] sm:$0xf]
    %v1382 = vld [vmem:[#allocation6 + $0x30] sm:$0xf]
    %v1383 = vld [vmem:[#allocation6 + $0x34] sm:$0xf]
    %v1384 = vld [vmem:[#allocation6 + $0x38] sm:$0xf]
    %v1385 = vld [vmem:[#allocation6 + $0x3c] sm:$0xf]
    %v1402 = vunpack.c.l.b16 %v1370
    %v1403 = vunpack.c.l.b16 %v1371
    %v1404 = vunpack.c.l.b16 %v1372
    %v1405 = vunpack.c.l.b16 %v1373
    %v1406 = vunpack.c.l.b16 %v1374
    %v1407 = vunpack.c.l.b16 %v1375
    %v1408 = vunpack.c.l.b16 %v1376
    %v1409 = vunpack.c.l.b16 %v1377
    %v1410 = vunpack.c.l.b16 %v1378
    %v1411 = vunpack.c.l.b16 %v1379
    %v1412 = vunpack.c.l.b16 %v1380
    %v1413 = vunpack.c.l.b16 %v1381
    %v1414 = vunpack.c.l.b16 %v1382
    %v1415 = vunpack.c.l.b16 %v1383
    %v1416 = vunpack.c.l.b16 %v1384
    %v1417 = vunpack.c.l.b16 %v1385
    %v1418 = vpack.c.b16 %v1403, %v1402
    %v1419 = vpack.c.b16 %v1405, %v1404
    %v1420 = vpack.c.b16 %v1407, %v1406
    %v1421 = vpack.c.b16 %v1409, %v1408
    %v1422 = vpack.c.b16 %v1411, %v1410
    %v1423 = vpack.c.b16 %v1413, %v1412
    %v1424 = vpack.c.b16 %v1415, %v1414
    %v1425 = vpack.c.b16 %v1417, %v1416
    %1434 = vmatprep.subr.bf16.mxu0 0
    %1435 = vmatpush1.bf16.msra.mxu0 %v1362
    %1436 = vmatprep.subr.bf16.mxu0 0
    %1437 = vmatpush1.bf16.msra.mxu0 %v1363
    %1438 = vmatprep.subr.bf16.mxu0 0
    %1439 = vmatpush1.bf16.msra.mxu0 %v1364
    %1440 = vmatprep.subr.bf16.mxu0 0
    %1441 = vmatpush1.bf16.msra.mxu0 %v1365
    %1442 = vmatprep.subr.bf16.mxu0 0
    %1443 = vmatpush1.bf16.msra.mxu0 %v1366
    %1444 = vmatprep.subr.bf16.mxu0 0
    %1445 = vmatpush1.bf16.msra.mxu0 %v1367
    %1446 = vmatprep.subr.bf16.mxu0 0
    %1447 = vmatpush1.bf16.msra.mxu0 %v1368
    %1448 = vmatprep.subr.bf16.mxu0 0
    %1449 = vmatpush1.bf16.msra.mxu0 %v1369
    %1450 = vmatprep.subr.bf16.mxu0 0
    %1451 = vmatpush1.bf16.msra.mxu0 0
    %1452 = vmatprep.subr.bf16.mxu0 0
    %1453 = vmatpush1.bf16.msra.mxu0 0
    %1454 = vmatprep.subr.bf16.mxu0 0
    %1455 = vmatpush1.bf16.msra.mxu0 0
    %1456 = vmatprep.subr.bf16.mxu0 0
    %1457 = vmatpush1.bf16.msra.mxu0 0
    %1458 = vmatprep.subr.bf16.mxu0 0
    %1459 = vmatpush1.bf16.msra.mxu0 0
    %1460 = vmatprep.subr.bf16.mxu0 0
    %1461 = vmatpush1.bf16.msra.mxu0 0
    %1462 = vmatprep.subr.bf16.mxu0 0
    %1463 = vmatpush1.bf16.msra.mxu0 0
    %1464 = vmatprep.subr.bf16.mxu0 0
    %1465 = vmatpush1.bf16.msra.mxu0 0
    %1466 = vmatprep.mubr.bf16.mxu0 0
    %1467 = vmatmul.mubr.bf16.gmra.mrb[0].mxu0 %v1418
    %v1468 = vpop.f32.mrb[0].mxu0
    %v1469 = vadd.f32 0.0, %v1468
    %v1470 = vpop.f32.mrb[0].mxu0
    %v1471 = vpop.f32.mrb[0].mxu0
    %v1472 = vadd.f32 0.0, %v1471
    %v1473 = vpop.f32.mrb[0].mxu0
    %1474 = vmatprep.mubr.bf16.mxu0 0
    %1475 = vmatmul.mubr.bf16.gmra.mrb[0].mxu0 %v1419
    %v1476 = vpop.f32.mrb[0].mxu0
    %v1477 = vadd.f32 0.0, %v1476
    %v1478 = vpop.f32.mrb[0].mxu0
    %v1479 = vpop.f32.mrb[0].mxu0
    %v1480 = vadd.f32 0.0, %v1479
    %v1481 = vpop.f32.mrb[0].mxu0
    %1482 = vmatprep.mubr.bf16.mxu0 0
    %1483 = vmatmul.mubr.bf16.gmra.mrb[0].mxu0 %v1420
    %v1484 = vpop.f32.mrb[0].mxu0
    %v1485 = vadd.f32 0.0, %v1484
    %v1486 = vpop.f32.mrb[0].mxu0
    %v1487 = vpop.f32.mrb[0].mxu0
    %v1488 = vadd.f32 0.0, %v1487
    %v1489 = vpop.f32.mrb[0].mxu0
    %1490 = vmatprep.mubr.bf16.mxu0 0
    %1491 = vmatmul.mubr.bf16.gmra.mrb[0].mxu0 %v1421
    %v1492 = vpop.f32.mrb[0].mxu0
    %v1493 = vadd.f32 0.0, %v1492
    %v1494 = vpop.f32.mrb[0].mxu0
    %v1495 = vpop.f32.mrb[0].mxu0
    %v1496 = vadd.f32 0.0, %v1495
    %v1497 = vpop.f32.mrb[0].mxu0
    %1498 = vmatprep.mubr.bf16.mxu0 0
    %1499 = vmatmul.mubr.bf16.gmra.mrb[0].mxu0 %v1422
    %v1500 = vpop.f32.mrb[0].mxu0
    %v1501 = vadd.f32 0.0, %v1500
    %v1502 = vpop.f32.mrb[0].mxu0
    %v1503 = vpop.f32.mrb[0].mxu0
    %v1504 = vadd.f32 0.0, %v1503
    %v1505 = vpop.f32.mrb[0].mxu0
    %1506 = vmatprep.mubr.bf16.mxu0 0
    %1507 = vmatmul.mubr.bf16.gmra.mrb[0].mxu0 %v1423
    %v1508 = vpop.f32.mrb[0].mxu0
    %v1509 = vadd.f32 0.0, %v1508
    %v1510 = vpop.f32.mrb[0].mxu0
    %v1511 = vpop.f32.mrb[0].mxu0
    %v1512 = vadd.f32 0.0, %v1511
    %v1513 = vpop.f32.mrb[0].mxu0
    %1514 = vmatprep.mubr.bf16.mxu0 0
    %1515 = vmatmul.mubr.bf16.gmra.mrb[0].mxu0 %v1424
    %v1516 = vpop.f32.mrb[0].mxu0
    %v1517 = vadd.f32 0.0, %v1516
    %v1518 = vpop.f32.mrb[0].mxu0
    %v1519 = vpop.f32.mrb[0].mxu0
    %v1520 = vadd.f32 0.0, %v1519
    %v1521 = vpop.f32.mrb[0].mxu0
    %1522 = vmatprep.mubr.bf16.mxu0 0
    %1523 = vmatmul.mubr.bf16.gmra.mrb[0].mxu0 %v1425
    %v1524 = vpop.f32.mrb[0].mxu0
    %v1525 = vadd.f32 0.0, %v1524
    %v1526 = vpop.f32.mrb[0].mxu0
    %v1527 = vpop.f32.mrb[0].mxu0
    %v1528 = vadd.f32 0.0, %v1527
    %v1529 = vpop.f32.mrb[0].mxu0
    %1530 = vdwg.mxu0
    %v1531 = vpack.c.bf16 %v1472, %v1469
    %v1532 = vpack.c.bf16 %v1480, %v1477
    %v1533 = vpack.c.bf16 %v1488, %v1485
    %v1534 = vpack.c.bf16 %v1496, %v1493
    %v1535 = vpack.c.bf16 %v1504, %v1501
    %v1536 = vpack.c.bf16 %v1512, %v1509
    %v1537 = vpack.c.bf16 %v1520, %v1517
    %v1538 = vpack.c.bf16 %v1528, %v1525
    %v1539 = vld [vmem:[#allocation15] sm:$0xf]
    %v1540 = vld [vmem:[#allocation15 + $0x4] sm:$0xf]
    %v1541 = vld [vmem:[#allocation15 + $0x8] sm:$0xf]
    %v1542 = vld [vmem:[#allocation15 + $0xc] sm:$0xf]
    %v1543 = vld [vmem:[#allocation15 + $0x10] sm:$0xf]
    %v1544 = vld [vmem:[#allocation15 + $0x14] sm:$0xf]
    %v1545 = vld [vmem:[#allocation15 + $0x18] sm:$0xf]
    %v1546 = vld [vmem:[#allocation15 + $0x1c] sm:$0xf]
    %v1547 = vld [vmem:[#allocation15 + $0x20] sm:$0xf]
    %v1548 = vld [vmem:[#allocation15 + $0x24] sm:$0xf]
    %v1549 = vld [vmem:[#allocation15 + $0x28] sm:$0xf]
    %v1550 = vld [vmem:[#allocation15 + $0x2c] sm:$0xf]
    %v1551 = vld [vmem:[#allocation15 + $0x30] sm:$0xf]
    %v1552 = vld [vmem:[#allocation15 + $0x34] sm:$0xf]
    %v1553 = vld [vmem:[#allocation15 + $0x38] sm:$0xf]
    %v1554 = vld [vmem:[#allocation15 + $0x3c] sm:$0xf]
    %v1555 = vld [vmem:[%s12 + $0x4] sm:$0x1]
    %v1556 = vlaneseq
    %v1557 = vshrl.u32 %v1556, 7
    %v1558 = vsub.s32 0, %v1557
    %v1559 = vrot.slane %v1555, %v1558
    %v1576 = vunpack.c.l.b16 %v1539
    %v1577 = vunpack.c.l.b16 %v1540
    %v1578 = vunpack.c.l.b16 %v1541
    %v1579 = vunpack.c.l.b16 %v1542
    %v1580 = vunpack.c.l.b16 %v1543
    %v1581 = vunpack.c.l.b16 %v1544
    %v1582 = vunpack.c.l.b16 %v1545
    %v1583 = vunpack.c.l.b16 %v1546
    %v1584 = vunpack.c.l.b16 %v1547
    %v1585 = vunpack.c.l.b16 %v1548
    %v1586 = vunpack.c.l.b16 %v1549
    %v1587 = vunpack.c.l.b16 %v1550
    %v1588 = vunpack.c.l.b16 %v1551
    %v1589 = vunpack.c.l.b16 %v1552
    %v1590 = vunpack.c.l.b16 %v1553
    %v1591 = vunpack.c.l.b16 %v1554
    %v1592 = vpack.c.b16 %v1577, %v1576
    %v1593 = vpack.c.b16 %v1579, %v1578
    %v1594 = vpack.c.b16 %v1581, %v1580
    %v1595 = vpack.c.b16 %v1583, %v1582
    %v1596 = vpack.c.b16 %v1585, %v1584
    %v1597 = vpack.c.b16 %v1587, %v1586
    %v1598 = vpack.c.b16 %v1589, %v1588
    %v1599 = vpack.c.b16 %v1591, %v1590
    %1608 = vmatprep.subr.bf16.mxu0 0
    %1609 = vmatpush1.bf16.msra.mxu0 %v1592
    %1610 = vmatprep.subr.bf16.mxu0 0
    %1611 = vmatpush1.bf16.msra.mxu0 %v1593
    %1612 = vmatprep.subr.bf16.mxu0 0
    %1613 = vmatpush1.bf16.msra.mxu0 %v1594
    %1614 = vmatprep.subr.bf16.mxu0 0
    %1615 = vmatpush1.bf16.msra.mxu0 %v1595
    %1616 = vmatprep.subr.bf16.mxu0 0
    %1617 = vmatpush1.bf16.msra.mxu0 %v1596
    %1618 = vmatprep.subr.bf16.mxu0 0
    %1619 = vmatpush1.bf16.msra.mxu0 %v1597
    %1620 = vmatprep.subr.bf16.mxu0 0
    %1621 = vmatpush1.bf16.msra.mxu0 %v1598
    %1622 = vmatprep.subr.bf16.mxu0 0
    %1623 = vmatpush1.bf16.msra.mxu0 %v1599
    %1624 = vmatprep.subr.bf16.mxu0 0
    %1625 = vmatpush1.bf16.msra.mxu0 0
    %1626 = vmatprep.subr.bf16.mxu0 0
    %1627 = vmatpush1.bf16.msra.mxu0 0
    %1628 = vmatprep.subr.bf16.mxu0 0
    %1629 = vmatpush1.bf16.msra.mxu0 0
    %1630 = vmatprep.subr.bf16.mxu0 0
    %1631 = vmatpush1.bf16.msra.mxu0 0
    %1632 = vmatprep.subr.bf16.mxu0 0
    %1633 = vmatpush1.bf16.msra.mxu0 0
    %1634 = vmatprep.subr.bf16.mxu0 0
    %1635 = vmatpush1.bf16.msra.mxu0 0
    %1636 = vmatprep.subr.bf16.mxu0 0
    %1637 = vmatpush1.bf16.msra.mxu0 0
    %1638 = vmatprep.subr.bf16.mxu0 0
    %1639 = vmatpush1.bf16.msra.mxu0 0
    %1640 = vmatprep.mubr.bf16.mxu0 0
    %1641 = vmatmul.mubr.bf16.gmra.mrb[0].mxu0 %v1531
    %v1642 = vpop.f32.mrb[0].mxu0
    %v1643 = vadd.f32 %v1559, %v1642
    %v1644 = vpop.f32.mrb[0].mxu0
    %v1645 = vpop.f32.mrb[0].mxu0
    %v1646 = vadd.f32 %v1559, %v1645
    %v1647 = vpop.f32.mrb[0].mxu0
    %1648 = vmatprep.mubr.bf16.mxu0 0
    %1649 = vmatmul.mubr.bf16.gmra.mrb[0].mxu0 %v1532
    %v1650 = vpop.f32.mrb[0].mxu0
    %v1651 = vadd.f32 %v1559, %v1650
    %v1652 = vpop.f32.mrb[0].mxu0
    %v1653 = vpop.f32.mrb[0].mxu0
    %v1654 = vadd.f32 %v1559, %v1653
    %v1655 = vpop.f32.mrb[0].mxu0
    %1656 = vmatprep.mubr.bf16.mxu0 0
    %1657 = vmatmul.mubr.bf16.gmra.mrb[0].mxu0 %v1533
    %v1658 = vpop.f32.mrb[0].mxu0
    %v1659 = vadd.f32 %v1559, %v1658
    %v1660 = vpop.f32.mrb[0].mxu0
    %v1661 = vpop.f32.mrb[0].mxu0
    %v1662 = vadd.f32 %v1559, %v1661
    %v1663 = vpop.f32.mrb[0].mxu0
    %1664 = vmatprep.mubr.bf16.mxu0 0
    %1665 = vmatmul.mubr.bf16.gmra.mrb[0].mxu0 %v1534
    %v1666 = vpop.f32.mrb[0].mxu0
    %v1667 = vadd.f32 %v1559, %v1666
    %v1668 = vpop.f32.mrb[0].mxu0
    %v1669 = vpop.f32.mrb[0].mxu0
    %v1670 = vadd.f32 %v1559, %v1669
    %v1671 = vpop.f32.mrb[0].mxu0
    %1672 = vmatprep.mubr.bf16.mxu0 0
    %1673 = vmatmul.mubr.bf16.gmra.mrb[0].mxu0 %v1535
    %v1674 = vpop.f32.mrb[0].mxu0
    %v1675 = vadd.f32 %v1559, %v1674
    %v1676 = vpop.f32.mrb[0].mxu0
    %v1677 = vpop.f32.mrb[0].mxu0
    %v1678 = vadd.f32 %v1559, %v1677
    %v1679 = vpop.f32.mrb[0].mxu0
    %1680 = vmatprep.mubr.bf16.mxu0 0
    %1681 = vmatmul.mubr.bf16.gmra.mrb[0].mxu0 %v1536
    %v1682 = vpop.f32.mrb[0].mxu0
    %v1683 = vadd.f32 %v1559, %v1682
    %v1684 = vpop.f32.mrb[0].mxu0
    %v1685 = vpop.f32.mrb[0].mxu0
    %v1686 = vadd.f32 %v1559, %v1685
    %v1687 = vpop.f32.mrb[0].mxu0
    %1688 = vmatprep.mubr.bf16.mxu0 0
    %1689 = vmatmul.mubr.bf16.gmra.mrb[0].mxu0 %v1537
    %v1690 = vpop.f32.mrb[0].mxu0
    %v1691 = vadd.f32 %v1559, %v1690
    %v1692 = vpop.f32.mrb[0].mxu0
    %v1693 = vpop.f32.mrb[0].mxu0
    %v1694 = vadd.f32 %v1559, %v1693
    %v1695 = vpop.f32.mrb[0].mxu0
    %1696 = vmatprep.mubr.bf16.mxu0 0
    %1697 = vmatmul.mubr.bf16.gmra.mrb[0].mxu0 %v1538
    %v1698 = vpop.f32.mrb[0].mxu0
    %v1699 = vadd.f32 %v1559, %v1698
    %v1700 = vpop.f32.mrb[0].mxu0
    %v1701 = vpop.f32.mrb[0].mxu0
    %v1702 = vadd.f32 %v1559, %v1701
    %v1703 = vpop.f32.mrb[0].mxu0
    %1704 = vdwg.mxu0
    %v1705 = vmax.f32 %v1643, 0.0
    %v1706 = vmax.f32 %v1646, 0.0
    %v1707 = vmax.f32 %v1651, 0.0
    %v1708 = vmax.f32 %v1654, 0.0
    %v1709 = vmax.f32 %v1659, 0.0
    %v1710 = vmax.f32 %v1662, 0.0
    %v1711 = vmax.f32 %v1667, 0.0
    %v1712 = vmax.f32 %v1670, 0.0
    %v1713 = vmax.f32 %v1675, 0.0
    %v1714 = vmax.f32 %v1678, 0.0
    %v1715 = vmax.f32 %v1683, 0.0
    %v1716 = vmax.f32 %v1686, 0.0
    %v1717 = vmax.f32 %v1691, 0.0
    %v1718 = vmax.f32 %v1694, 0.0
    %v1719 = vmax.f32 %v1699, 0.0
    %v1720 = vmax.f32 %v1702, 0.0
    %v1721 = vpack.c.bf16 %v1706, %v1705
    %v1722 = vpack.c.bf16 %v1708, %v1707
    %v1723 = vpack.c.bf16 %v1710, %v1709
    %v1724 = vpack.c.bf16 %v1712, %v1711
    %v1725 = vpack.c.bf16 %v1714, %v1713
    %v1726 = vpack.c.bf16 %v1716, %v1715
    %v1727 = vpack.c.bf16 %v1718, %v1717
    %v1728 = vpack.c.bf16 %v1720, %v1719
    %v1729 = vld [vmem:[#allocation16] sm:$0xf]
    %v1730 = vld [vmem:[#allocation16 + $0x4] sm:$0xf]
    %v1731 = vld [vmem:[#allocation16 + $0x8] sm:$0xf]
    %v1732 = vld [vmem:[#allocation16 + $0xc] sm:$0xf]
    %v1733 = vld [vmem:[#allocation16 + $0x10] sm:$0xf]
    %v1734 = vld [vmem:[#allocation16 + $0x14] sm:$0xf]
    %v1735 = vld [vmem:[#allocation16 + $0x18] sm:$0xf]
    %v1736 = vld [vmem:[#allocation16 + $0x1c] sm:$0xf]
    %v1737 = vld [vmem:[#allocation16 + $0x20] sm:$0xf]
    %v1738 = vld [vmem:[#allocation16 + $0x24] sm:$0xf]
    %v1739 = vld [vmem:[#allocation16 + $0x28] sm:$0xf]
    %v1740 = vld [vmem:[#allocation16 + $0x2c] sm:$0xf]
    %v1741 = vld [vmem:[#allocation16 + $0x30] sm:$0xf]
    %v1742 = vld [vmem:[#allocation16 + $0x34] sm:$0xf]
    %v1743 = vld [vmem:[#allocation16 + $0x38] sm:$0xf]
    %v1744 = vld [vmem:[#allocation16 + $0x3c] sm:$0xf]
    %v1745 = vld [vmem:[%s12 + $0x5] sm:$0x1]
    %v1746 = vlaneseq
    %v1747 = vshrl.u32 %v1746, 7
    %v1748 = vsub.s32 0, %v1747
    %v1749 = vrot.slane %v1745, %v1748
    %v1766 = vunpack.c.l.b16 %v1729
    %v1767 = vunpack.c.l.b16 %v1730
    %v1768 = vunpack.c.l.b16 %v1731
    %v1769 = vunpack.c.l.b16 %v1732
    %v1770 = vunpack.c.l.b16 %v1733
    %v1771 = vunpack.c.l.b16 %v1734
    %v1772 = vunpack.c.l.b16 %v1735
    %v1773 = vunpack.c.l.b16 %v1736
    %v1774 = vunpack.c.l.b16 %v1737
    %v1775 = vunpack.c.l.b16 %v1738
    %v1776 = vunpack.c.l.b16 %v1739
    %v1777 = vunpack.c.l.b16 %v1740
    %v1778 = vunpack.c.l.b16 %v1741
    %v1779 = vunpack.c.l.b16 %v1742
    %v1780 = vunpack.c.l.b16 %v1743
    %v1781 = vunpack.c.l.b16 %v1744
    %v1782 = vpack.c.b16 %v1767, %v1766
    %v1783 = vpack.c.b16 %v1769, %v1768
    %v1784 = vpack.c.b16 %v1771, %v1770
    %v1785 = vpack.c.b16 %v1773, %v1772
    %v1786 = vpack.c.b16 %v1775, %v1774
    %v1787 = vpack.c.b16 %v1777, %v1776
    %v1788 = vpack.c.b16 %v1779, %v1778
    %v1789 = vpack.c.b16 %v1781, %v1780
    %1798 = vmatprep.subr.bf16.mxu0 0
    %1799 = vmatpush1.bf16.msra.mxu0 %v1782
    %1800 = vmatprep.subr.bf16.mxu0 0
    %1801 = vmatpush1.bf16.msra.mxu0 %v1783
    %1802 = vmatprep.subr.bf16.mxu0 0
    %1803 = vmatpush1.bf16.msra.mxu0 %v1784
    %1804 = vmatprep.subr.bf16.mxu0 0
    %1805 = vmatpush1.bf16.msra.mxu0 %v1785
    %1806 = vmatprep.subr.bf16.mxu0 0
    %1807 = vmatpush1.bf16.msra.mxu0 %v1786
    %1808 = vmatprep.subr.bf16.mxu0 0
    %1809 = vmatpush1.bf16.msra.mxu0 %v1787
    %1810 = vmatprep.subr.bf16.mxu0 0
    %1811 = vmatpush1.bf16.msra.mxu0 %v1788
    %1812 = vmatprep.subr.bf16.mxu0 0
    %1813 = vmatpush1.bf16.msra.mxu0 %v1789
    %1814 = vmatprep.subr.bf16.mxu0 0
    %1815 = vmatpush1.bf16.msra.mxu0 0
    %1816 = vmatprep.subr.bf16.mxu0 0
    %1817 = vmatpush1.bf16.msra.mxu0 0
    %1818 = vmatprep.subr.bf16.mxu0 0
    %1819 = vmatpush1.bf16.msra.mxu0 0
    %1820 = vmatprep.subr.bf16.mxu0 0
    %1821 = vmatpush1.bf16.msra.mxu0 0
    %1822 = vmatprep.subr.bf16.mxu0 0
    %1823 = vmatpush1.bf16.msra.mxu0 0
    %1824 = vmatprep.subr.bf16.mxu0 0
    %1825 = vmatpush1.bf16.msra.mxu0 0
    %1826 = vmatprep.subr.bf16.mxu0 0
    %1827 = vmatpush1.bf16.msra.mxu0 0
    %1828 = vmatprep.subr.bf16.mxu0 0
    %1829 = vmatpush1.bf16.msra.mxu0 0
    %1830 = vmatprep.mubr.bf16.mxu0 0
    %1831 = vmatmul.mubr.bf16.gmra.mrb[0].mxu0 %v1721
    %v1832 = vpop.f32.mrb[0].mxu0
    %v1833 = vadd.f32 %v1749, %v1832
    %v1834 = vpop.f32.mrb[0].mxu0
    %v1835 = vpop.f32.mrb[0].mxu0
    %v1836 = vadd.f32 %v1749, %v1835
    %v1837 = vpop.f32.mrb[0].mxu0
    %1838 = vmatprep.mubr.bf16.mxu0 0
    %1839 = vmatmul.mubr.bf16.gmra.mrb[0].mxu0 %v1722
    %v1840 = vpop.f32.mrb[0].mxu0
    %v1841 = vadd.f32 %v1749, %v1840
    %v1842 = vpop.f32.mrb[0].mxu0
    %v1843 = vpop.f32.mrb[0].mxu0
    %v1844 = vadd.f32 %v1749, %v1843
    %v1845 = vpop.f32.mrb[0].mxu0
    %1846 = vmatprep.mubr.bf16.mxu0 0
    %1847 = vmatmul.mubr.bf16.gmra.mrb[0].mxu0 %v1723
    %v1848 = vpop.f32.mrb[0].mxu0
    %v1849 = vadd.f32 %v1749, %v1848
    %v1850 = vpop.f32.mrb[0].mxu0
    %v1851 = vpop.f32.mrb[0].mxu0
    %v1852 = vadd.f32 %v1749, %v1851
    %v1853 = vpop.f32.mrb[0].mxu0
    %1854 = vmatprep.mubr.bf16.mxu0 0
    %1855 = vmatmul.mubr.bf16.gmra.mrb[0].mxu0 %v1724
    %v1856 = vpop.f32.mrb[0].mxu0
    %v1857 = vadd.f32 %v1749, %v1856
    %v1858 = vpop.f32.mrb[0].mxu0
    %v1859 = vpop.f32.mrb[0].mxu0
    %v1860 = vadd.f32 %v1749, %v1859
    %v1861 = vpop.f32.mrb[0].mxu0
    %1862 = vmatprep.mubr.bf16.mxu0 0
    %1863 = vmatmul.mubr.bf16.gmra.mrb[0].mxu0 %v1725
    %v1864 = vpop.f32.mrb[0].mxu0
    %v1865 = vadd.f32 %v1749, %v1864
    %v1866 = vpop.f32.mrb[0].mxu0
    %v1867 = vpop.f32.mrb[0].mxu0
    %v1868 = vadd.f32 %v1749, %v1867
    %v1869 = vpop.f32.mrb[0].mxu0
    %1870 = vmatprep.mubr.bf16.mxu0 0
    %1871 = vmatmul.mubr.bf16.gmra.mrb[0].mxu0 %v1726
    %v1872 = vpop.f32.mrb[0].mxu0
    %v1873 = vadd.f32 %v1749, %v1872
    %v1874 = vpop.f32.mrb[0].mxu0
    %v1875 = vpop.f32.mrb[0].mxu0
    %v1876 = vadd.f32 %v1749, %v1875
    %v1877 = vpop.f32.mrb[0].mxu0
    %1878 = vmatprep.mubr.bf16.mxu0 0
    %1879 = vmatmul.mubr.bf16.gmra.mrb[0].mxu0 %v1727
    %v1880 = vpop.f32.mrb[0].mxu0
    %v1881 = vadd.f32 %v1749, %v1880
    %v1882 = vpop.f32.mrb[0].mxu0
    %v1883 = vpop.f32.mrb[0].mxu0
    %v1884 = vadd.f32 %v1749, %v1883
    %v1885 = vpop.f32.mrb[0].mxu0
    %1886 = vmatprep.mubr.bf16.mxu0 0
    %1887 = vmatmul.mubr.bf16.gmra.mrb[0].mxu0 %v1728
    %v1888 = vpop.f32.mrb[0].mxu0
    %v1889 = vadd.f32 %v1749, %v1888
    %v1890 = vpop.f32.mrb[0].mxu0
    %v1891 = vpop.f32.mrb[0].mxu0
    %v1892 = vadd.f32 %v1749, %v1891
    %v1893 = vpop.f32.mrb[0].mxu0
    %1894 = vdwg.mxu0
    %v1895 = vmax.f32 %v1833, 0.0
    %v1896 = vmax.f32 %v1836, 0.0
    %v1897 = vmax.f32 %v1841, 0.0
    %v1898 = vmax.f32 %v1844, 0.0
    %v1899 = vmax.f32 %v1849, 0.0
    %v1900 = vmax.f32 %v1852, 0.0
    %v1901 = vmax.f32 %v1857, 0.0
    %v1902 = vmax.f32 %v1860, 0.0
    %v1903 = vmax.f32 %v1865, 0.0
    %v1904 = vmax.f32 %v1868, 0.0
    %v1905 = vmax.f32 %v1873, 0.0
    %v1906 = vmax.f32 %v1876, 0.0
    %v1907 = vmax.f32 %v1881, 0.0
    %v1908 = vmax.f32 %v1884, 0.0
    %v1909 = vmax.f32 %v1889, 0.0
    %v1910 = vmax.f32 %v1892, 0.0
    %v1911 = vpack.c.bf16 %v1896, %v1895
    %v1912 = vpack.c.bf16 %v1898, %v1897
    %v1913 = vpack.c.bf16 %v1900, %v1899
    %v1914 = vpack.c.bf16 %v1902, %v1901
    %v1915 = vpack.c.bf16 %v1904, %v1903
    %v1916 = vpack.c.bf16 %v1906, %v1905
    %v1917 = vpack.c.bf16 %v1908, %v1907
    %v1918 = vpack.c.bf16 %v1910, %v1909
    %v1919 = vld [vmem:[%s12 + $0x6] sm:$0x1]
    %v1920 = vld [vmem:[%s12 + $0x7] sm:$0x1]
    %v1921 = vld [vmem:[#allocation18] sm:$0xf]
    %v1922 = vld [vmem:[#allocation18 + $0x4] sm:$0xf]
    %v1923 = vld [vmem:[#allocation18 + $0x8] sm:$0xf]
    %v1924 = vld [vmem:[#allocation18 + $0xc] sm:$0xf]
    %v1925 = vld [vmem:[#allocation18 + $0x10] sm:$0xf]
    %v1926 = vld [vmem:[#allocation18 + $0x14] sm:$0xf]
    %v1927 = vld [vmem:[#allocation18 + $0x18] sm:$0xf]
    %v1928 = vld [vmem:[#allocation18 + $0x1c] sm:$0xf]
    %v1929 = vld [vmem:[#allocation18 + $0x20] sm:$0xf]
    %v1930 = vld [vmem:[#allocation18 + $0x24] sm:$0xf]
    %v1931 = vld [vmem:[#allocation18 + $0x28] sm:$0xf]
    %v1932 = vld [vmem:[#allocation18 + $0x2c] sm:$0xf]
    %v1933 = vld [vmem:[#allocation18 + $0x30] sm:$0xf]
    %v1934 = vld [vmem:[#allocation18 + $0x34] sm:$0xf]
    %v1935 = vld [vmem:[#allocation18 + $0x38] sm:$0xf]
    %v1936 = vld [vmem:[#allocation18 + $0x3c] sm:$0xf]
    %v1937 = vlaneseq
    %v1938 = vshrl.u32 %v1937, 7
    %v1939 = vsub.s32 0, %v1938
    %v1940 = vrot.slane %v1919, %v1939
    %v1957 = vunpack.c.l.b16 %v1921
    %v1958 = vunpack.c.l.b16 %v1922
    %v1959 = vunpack.c.l.b16 %v1923
    %v1960 = vunpack.c.l.b16 %v1924
    %v1961 = vunpack.c.l.b16 %v1925
    %v1962 = vunpack.c.l.b16 %v1926
    %v1963 = vunpack.c.l.b16 %v1927
    %v1964 = vunpack.c.l.b16 %v1928
    %v1965 = vunpack.c.l.b16 %v1929
    %v1966 = vunpack.c.l.b16 %v1930
    %v1967 = vunpack.c.l.b16 %v1931
    %v1968 = vunpack.c.l.b16 %v1932
    %v1969 = vunpack.c.l.b16 %v1933
    %v1970 = vunpack.c.l.b16 %v1934
    %v1971 = vunpack.c.l.b16 %v1935
    %v1972 = vunpack.c.l.b16 %v1936
    %v1973 = vpack.c.b16 %v1958, %v1957
    %v1974 = vpack.c.b16 %v1960, %v1959
    %v1975 = vpack.c.b16 %v1962, %v1961
    %v1976 = vpack.c.b16 %v1964, %v1963
    %v1977 = vpack.c.b16 %v1966, %v1965
    %v1978 = vpack.c.b16 %v1968, %v1967
    %v1979 = vpack.c.b16 %v1970, %v1969
    %v1980 = vpack.c.b16 %v1972, %v1971
    %1989 = vmatprep.subr.bf16.mxu0 0
    %1990 = vmatpush1.bf16.msra.mxu0 %v1973
    %1991 = vmatprep.subr.bf16.mxu0 0
    %1992 = vmatpush1.bf16.msra.mxu0 %v1974
    %1993 = vmatprep.subr.bf16.mxu0 0
    %1994 = vmatpush1.bf16.msra.mxu0 %v1975
    %1995 = vmatprep.subr.bf16.mxu0 0
    %1996 = vmatpush1.bf16.msra.mxu0 %v1976
    %1997 = vmatprep.subr.bf16.mxu0 0
    %1998 = vmatpush1.bf16.msra.mxu0 %v1977
    %1999 = vmatprep.subr.bf16.mxu0 0
    %2000 = vmatpush1.bf16.msra.mxu0 %v1978
    %2001 = vmatprep.subr.bf16.mxu0 0
    %2002 = vmatpush1.bf16.msra.mxu0 %v1979
    %2003 = vmatprep.subr.bf16.mxu0 0
    %2004 = vmatpush1.bf16.msra.mxu0 %v1980
    %2005 = vmatprep.subr.bf16.mxu0 0
    %2006 = vmatpush1.bf16.msra.mxu0 0
    %2007 = vmatprep.subr.bf16.mxu0 0
    %2008 = vmatpush1.bf16.msra.mxu0 0
    %2009 = vmatprep.subr.bf16.mxu0 0
    %2010 = vmatpush1.bf16.msra.mxu0 0
    %2011 = vmatprep.subr.bf16.mxu0 0
    %2012 = vmatpush1.bf16.msra.mxu0 0
    %2013 = vmatprep.subr.bf16.mxu0 0
    %2014 = vmatpush1.bf16.msra.mxu0 0
    %2015 = vmatprep.subr.bf16.mxu0 0
    %2016 = vmatpush1.bf16.msra.mxu0 0
    %2017 = vmatprep.subr.bf16.mxu0 0
    %2018 = vmatpush1.bf16.msra.mxu0 0
    %2019 = vmatprep.subr.bf16.mxu0 0
    %2020 = vmatpush1.bf16.msra.mxu0 0
    %2021 = vmatprep.mubr.bf16.mxu0 0
    %2022 = vmatmul.mubr.bf16.gmra.mrb[0].mxu0 %v1911
    %v2023 = vpop.f32.mrb[0].mxu0
    %v2024 = vadd.f32 %v1940, %v2023
    %v2025 = vpop.f32.mrb[0].mxu0
    %v2026 = vpop.f32.mrb[0].mxu0
    %v2027 = vadd.f32 %v1940, %v2026
    %v2028 = vpop.f32.mrb[0].mxu0
    %2029 = vmatprep.mubr.bf16.mxu0 0
    %2030 = vmatmul.mubr.bf16.gmra.mrb[0].mxu0 %v1912
    %v2031 = vpop.f32.mrb[0].mxu0
    %v2032 = vadd.f32 %v1940, %v2031
    %v2033 = vpop.f32.mrb[0].mxu0
    %v2034 = vpop.f32.mrb[0].mxu0
    %v2035 = vadd.f32 %v1940, %v2034
    %v2036 = vpop.f32.mrb[0].mxu0
    %2037 = vmatprep.mubr.bf16.mxu0 0
    %2038 = vmatmul.mubr.bf16.gmra.mrb[0].mxu0 %v1913
    %v2039 = vpop.f32.mrb[0].mxu0
    %v2040 = vadd.f32 %v1940, %v2039
    %v2041 = vpop.f32.mrb[0].mxu0
    %v2042 = vpop.f32.mrb[0].mxu0
    %v2043 = vadd.f32 %v1940, %v2042
    %v2044 = vpop.f32.mrb[0].mxu0
    %2045 = vmatprep.mubr.bf16.mxu0 0
    %2046 = vmatmul.mubr.bf16.gmra.mrb[0].mxu0 %v1914
    %v2047 = vpop.f32.mrb[0].mxu0
    %v2048 = vadd.f32 %v1940, %v2047
    %v2049 = vpop.f32.mrb[0].mxu0
    %v2050 = vpop.f32.mrb[0].mxu0
    %v2051 = vadd.f32 %v1940, %v2050
    %v2052 = vpop.f32.mrb[0].mxu0
    %2053 = vmatprep.mubr.bf16.mxu0 0
    %2054 = vmatmul.mubr.bf16.gmra.mrb[0].mxu0 %v1915
    %v2055 = vpop.f32.mrb[0].mxu0
    %v2056 = vadd.f32 %v1940, %v2055
    %v2057 = vpop.f32.mrb[0].mxu0
    %v2058 = vpop.f32.mrb[0].mxu0
    %v2059 = vadd.f32 %v1940, %v2058
    %v2060 = vpop.f32.mrb[0].mxu0
    %2061 = vmatprep.mubr.bf16.mxu0 0
    %2062 = vmatmul.mubr.bf16.gmra.mrb[0].mxu0 %v1916
    %v2063 = vpop.f32.mrb[0].mxu0
    %v2064 = vadd.f32 %v1940, %v2063
    %v2065 = vpop.f32.mrb[0].mxu0
    %v2066 = vpop.f32.mrb[0].mxu0
    %v2067 = vadd.f32 %v1940, %v2066
    %v2068 = vpop.f32.mrb[0].mxu0
    %2069 = vmatprep.mubr.bf16.mxu0 0
    %2070 = vmatmul.mubr.bf16.gmra.mrb[0].mxu0 %v1917
    %v2071 = vpop.f32.mrb[0].mxu0
    %v2072 = vadd.f32 %v1940, %v2071
    %v2073 = vpop.f32.mrb[0].mxu0
    %v2074 = vpop.f32.mrb[0].mxu0
    %v2075 = vadd.f32 %v1940, %v2074
    %v2076 = vpop.f32.mrb[0].mxu0
    %2077 = vmatprep.mubr.bf16.mxu0 0
    %2078 = vmatmul.mubr.bf16.gmra.mrb[0].mxu0 %v1918
    %v2079 = vpop.f32.mrb[0].mxu0
    %v2080 = vadd.f32 %v1940, %v2079
    %v2081 = vpop.f32.mrb[0].mxu0
    %v2082 = vpop.f32.mrb[0].mxu0
    %v2083 = vadd.f32 %v1940, %v2082
    %v2084 = vpop.f32.mrb[0].mxu0
    %2085 = vdwg.mxu0
    %v2086 = vmax.f32 %v2024, 0.0
    %v2087 = vmax.f32 %v2027, 0.0
    %v2088 = vmax.f32 %v2032, 0.0
    %v2089 = vmax.f32 %v2035, 0.0
    %v2090 = vmax.f32 %v2040, 0.0
    %v2091 = vmax.f32 %v2043, 0.0
    %v2092 = vmax.f32 %v2048, 0.0
    %v2093 = vmax.f32 %v2051, 0.0
    %v2094 = vmax.f32 %v2056, 0.0
    %v2095 = vmax.f32 %v2059, 0.0
    %v2096 = vmax.f32 %v2064, 0.0
    %v2097 = vmax.f32 %v2067, 0.0
    %v2098 = vmax.f32 %v2072, 0.0
    %v2099 = vmax.f32 %v2075, 0.0
    %v2100 = vmax.f32 %v2080, 0.0
    %v2101 = vmax.f32 %v2083, 0.0
    %v2102 = vpack.c.bf16 %v2087, %v2086
    %v2103 = vpack.c.bf16 %v2089, %v2088
    %v2104 = vpack.c.bf16 %v2091, %v2090
    %v2105 = vpack.c.bf16 %v2093, %v2092
    %v2106 = vpack.c.bf16 %v2095, %v2094
    %v2107 = vpack.c.bf16 %v2097, %v2096
    %v2108 = vpack.c.bf16 %v2099, %v2098
    %v2109 = vpack.c.bf16 %v2101, %v2100
    %v2110 = vld [vmem:[#allocation19] sm:$0xf]
    %v2111 = vld [vmem:[#allocation19 + $0x4] sm:$0xf]
    %v2112 = vld [vmem:[#allocation19 + $0x8] sm:$0xf]
    %v2113 = vld [vmem:[#allocation19 + $0xc] sm:$0xf]
    %v2114 = vld [vmem:[#allocation19 + $0x10] sm:$0xf]
    %v2115 = vld [vmem:[#allocation19 + $0x14] sm:$0xf]
    %v2116 = vld [vmem:[#allocation19 + $0x18] sm:$0xf]
    %v2117 = vld [vmem:[#allocation19 + $0x1c] sm:$0xf]
    %v2118 = vld [vmem:[#allocation19 + $0x20] sm:$0xf]
    %v2119 = vld [vmem:[#allocation19 + $0x24] sm:$0xf]
    %v2120 = vld [vmem:[#allocation19 + $0x28] sm:$0xf]
    %v2121 = vld [vmem:[#allocation19 + $0x2c] sm:$0xf]
    %v2122 = vld [vmem:[#allocation19 + $0x30] sm:$0xf]
    %v2123 = vld [vmem:[#allocation19 + $0x34] sm:$0xf]
    %v2124 = vld [vmem:[#allocation19 + $0x38] sm:$0xf]
    %v2125 = vld [vmem:[#allocation19 + $0x3c] sm:$0xf]
    %v2126 = vlaneseq
    %v2127 = vshrl.u32 %v2126, 7
    %v2128 = vsub.s32 0, %v2127
    %v2129 = vrot.slane %v1920, %v2128
    %v2146 = vunpack.c.l.b16 %v2110
    %v2147 = vunpack.c.l.b16 %v2111
    %v2148 = vunpack.c.l.b16 %v2112
    %v2149 = vunpack.c.l.b16 %v2113
    %v2150 = vunpack.c.l.b16 %v2114
    %v2151 = vunpack.c.l.b16 %v2115
    %v2152 = vunpack.c.l.b16 %v2116
    %v2153 = vunpack.c.l.b16 %v2117
    %v2154 = vunpack.c.l.b16 %v2118
    %v2155 = vunpack.c.l.b16 %v2119
    %v2156 = vunpack.c.l.b16 %v2120
    %v2157 = vunpack.c.l.b16 %v2121
    %v2158 = vunpack.c.l.b16 %v2122
    %v2159 = vunpack.c.l.b16 %v2123
    %v2160 = vunpack.c.l.b16 %v2124
    %v2161 = vunpack.c.l.b16 %v2125
    %v2162 = vpack.c.b16 %v2147, %v2146
    %v2163 = vpack.c.b16 %v2149, %v2148
    %v2164 = vpack.c.b16 %v2151, %v2150
    %v2165 = vpack.c.b16 %v2153, %v2152
    %v2166 = vpack.c.b16 %v2155, %v2154
    %v2167 = vpack.c.b16 %v2157, %v2156
    %v2168 = vpack.c.b16 %v2159, %v2158
    %v2169 = vpack.c.b16 %v2161, %v2160
    %2178 = vmatprep.subr.bf16.mxu0 0
    %2179 = vmatpush1.bf16.msra.mxu0 %v2162
    %2180 = vmatprep.subr.bf16.mxu0 0
    %2181 = vmatpush1.bf16.msra.mxu0 %v2163
    %2182 = vmatprep.subr.bf16.mxu0 0
    %2183 = vmatpush1.bf16.msra.mxu0 %v2164
    %2184 = vmatprep.subr.bf16.mxu0 0
    %2185 = vmatpush1.bf16.msra.mxu0 %v2165
    %2186 = vmatprep.subr.bf16.mxu0 0
    %2187 = vmatpush1.bf16.msra.mxu0 %v2166
    %2188 = vmatprep.subr.bf16.mxu0 0
    %2189 = vmatpush1.bf16.msra.mxu0 %v2167
    %2190 = vmatprep.subr.bf16.mxu0 0
    %2191 = vmatpush1.bf16.msra.mxu0 %v2168
    %2192 = vmatprep.subr.bf16.mxu0 0
    %2193 = vmatpush1.bf16.msra.mxu0 %v2169
    %2194 = vmatprep.subr.bf16.mxu0 0
    %2195 = vmatpush1.bf16.msra.mxu0 0
    %2196 = vmatprep.subr.bf16.mxu0 0
    %2197 = vmatpush1.bf16.msra.mxu0 0
    %2198 = vmatprep.subr.bf16.mxu0 0
    %2199 = vmatpush1.bf16.msra.mxu0 0
    %2200 = vmatprep.subr.bf16.mxu0 0
    %2201 = vmatpush1.bf16.msra.mxu0 0
    %2202 = vmatprep.subr.bf16.mxu0 0
    %2203 = vmatpush1.bf16.msra.mxu0 0
    %2204 = vmatprep.subr.bf16.mxu0 0
    %2205 = vmatpush1.bf16.msra.mxu0 0
    %2206 = vmatprep.subr.bf16.mxu0 0
    %2207 = vmatpush1.bf16.msra.mxu0 0
    %2208 = vmatprep.subr.bf16.mxu0 0
    %2209 = vmatpush1.bf16.msra.mxu0 0
    %2210 = vmatprep.mubr.bf16.mxu0 0
    %2211 = vmatmul.mubr.bf16.gmra.mrb[0].mxu0 %v2102
    %v2212 = vpop.f32.mrb[0].mxu0
    %v2213 = vadd.f32 %v2129, %v2212
    %v2214 = vpop.f32.mrb[0].mxu0
    %v2215 = vpop.f32.mrb[0].mxu0
    %v2216 = vadd.f32 %v2129, %v2215
    %v2217 = vpop.f32.mrb[0].mxu0
    %2218 = vmatprep.mubr.bf16.mxu0 0
    %2219 = vmatmul.mubr.bf16.gmra.mrb[0].mxu0 %v2103
    %v2220 = vpop.f32.mrb[0].mxu0
    %v2221 = vadd.f32 %v2129, %v2220
    %v2222 = vpop.f32.mrb[0].mxu0
    %v2223 = vpop.f32.mrb[0].mxu0
    %v2224 = vadd.f32 %v2129, %v2223
    %v2225 = vpop.f32.mrb[0].mxu0
    %2226 = vmatprep.mubr.bf16.mxu0 0
    %2227 = vmatmul.mubr.bf16.gmra.mrb[0].mxu0 %v2104
    %v2228 = vpop.f32.mrb[0].mxu0
    %v2229 = vadd.f32 %v2129, %v2228
    %v2230 = vpop.f32.mrb[0].mxu0
    %v2231 = vpop.f32.mrb[0].mxu0
    %v2232 = vadd.f32 %v2129, %v2231
    %v2233 = vpop.f32.mrb[0].mxu0
    %2234 = vmatprep.mubr.bf16.mxu0 0
    %2235 = vmatmul.mubr.bf16.gmra.mrb[0].mxu0 %v2105
    %v2236 = vpop.f32.mrb[0].mxu0
    %v2237 = vadd.f32 %v2129, %v2236
    %v2238 = vpop.f32.mrb[0].mxu0
    %v2239 = vpop.f32.mrb[0].mxu0
    %v2240 = vadd.f32 %v2129, %v2239
    %v2241 = vpop.f32.mrb[0].mxu0
    %2242 = vmatprep.mubr.bf16.mxu0 0
    %2243 = vmatmul.mubr.bf16.gmra.mrb[0].mxu0 %v2106
    %v2244 = vpop.f32.mrb[0].mxu0
    %v2245 = vadd.f32 %v2129, %v2244
    %v2246 = vpop.f32.mrb[0].mxu0
    %v2247 = vpop.f32.mrb[0].mxu0
    %v2248 = vadd.f32 %v2129, %v2247
    %v2249 = vpop.f32.mrb[0].mxu0
    %2250 = vmatprep.mubr.bf16.mxu0 0
    %2251 = vmatmul.mubr.bf16.gmra.mrb[0].mxu0 %v2107
    %v2252 = vpop.f32.mrb[0].mxu0
    %v2253 = vadd.f32 %v2129, %v2252
    %v2254 = vpop.f32.mrb[0].mxu0
    %v2255 = vpop.f32.mrb[0].mxu0
    %v2256 = vadd.f32 %v2129, %v2255
    %v2257 = vpop.f32.mrb[0].mxu0
    %2258 = vmatprep.mubr.bf16.mxu0 0
    %2259 = vmatmul.mubr.bf16.gmra.mrb[0].mxu0 %v2108
    %v2260 = vpop.f32.mrb[0].mxu0
    %v2261 = vadd.f32 %v2129, %v2260
    %v2262 = vpop.f32.mrb[0].mxu0
    %v2263 = vpop.f32.mrb[0].mxu0
    %v2264 = vadd.f32 %v2129, %v2263
    %v2265 = vpop.f32.mrb[0].mxu0
    %2266 = vmatprep.mubr.bf16.mxu0 0
    %2267 = vmatmul.mubr.bf16.gmra.mrb[0].mxu0 %v2109
    %v2268 = vpop.f32.mrb[0].mxu0
    %v2269 = vadd.f32 %v2129, %v2268
    %v2270 = vpop.f32.mrb[0].mxu0
    %v2271 = vpop.f32.mrb[0].mxu0
    %v2272 = vadd.f32 %v2129, %v2271
    %v2273 = vpop.f32.mrb[0].mxu0
    %2274 = vdwg.mxu0
    %v2275 = vlaneseq
    %v2276 = vand.u32 %v2275, 127
    %vm2277 = vcmp.lt.s32.totalorder %v2276, 4
    %v2278 = vsel %vm2277, %v2213, -1e+30
    %v2279 = vsel %vm2277, %v2216, -1e+30
    %v2280 = vsel %vm2277, %v2221, -1e+30
    %v2281 = vsel %vm2277, %v2224, -1e+30
    %v2282 = vsel %vm2277, %v2229, -1e+30
    %v2283 = vsel %vm2277, %v2232, -1e+30
    %v2284 = vsel %vm2277, %v2237, -1e+30
    %v2285 = vsel %vm2277, %v2240, -1e+30
    %v2286 = vsel %vm2277, %v2245, -1e+30
    %v2287 = vsel %vm2277, %v2248, -1e+30
    %v2288 = vsel %vm2277, %v2253, -1e+30
    %v2289 = vsel %vm2277, %v2256, -1e+30
    %v2290 = vsel %vm2277, %v2261, -1e+30
    %v2291 = vsel %vm2277, %v2264, -1e+30
    %v2292 = vsel %vm2277, %v2269, -1e+30
    %v2293 = vsel %vm2277, %v2272, -1e+30
    %2294 = vmax.xlane.f32.xlu0 %v2278
    %v2295 = vpop.xlane.xlu0 %2294
    %2296 = vmax.xlane.f32.xlu0 %v2279
    %v2297 = vpop.xlane.xlu0 %2296
    %2298 = vmax.xlane.f32.xlu0 %v2280
    %v2299 = vpop.xlane.xlu0 %2298
    %2300 = vmax.xlane.f32.xlu0 %v2281
    %v2301 = vpop.xlane.xlu0 %2300
    %2302 = vmax.xlane.f32.xlu0 %v2282
    %v2303 = vpop.xlane.xlu0 %2302
    %2304 = vmax.xlane.f32.xlu0 %v2283
    %v2305 = vpop.xlane.xlu0 %2304
    %2306 = vmax.xlane.f32.xlu0 %v2284
    %v2307 = vpop.xlane.xlu0 %2306
    %2308 = vmax.xlane.f32.xlu0 %v2285
    %v2309 = vpop.xlane.xlu0 %2308
    %2310 = vmax.xlane.f32.xlu0 %v2286
    %v2311 = vpop.xlane.xlu0 %2310
    %2312 = vmax.xlane.f32.xlu0 %v2287
    %v2313 = vpop.xlane.xlu0 %2312
    %2314 = vmax.xlane.f32.xlu0 %v2288
    %v2315 = vpop.xlane.xlu0 %2314
    %2316 = vmax.xlane.f32.xlu0 %v2289
    %v2317 = vpop.xlane.xlu0 %2316
    %2318 = vmax.xlane.f32.xlu0 %v2290
    %v2319 = vpop.xlane.xlu0 %2318
    %2320 = vmax.xlane.f32.xlu0 %v2291
    %v2321 = vpop.xlane.xlu0 %2320
    %2322 = vmax.xlane.f32.xlu0 %v2292
    %v2323 = vpop.xlane.xlu0 %2322
    %2324 = vmax.xlane.f32.xlu0 %v2293
    %v2325 = vpop.xlane.xlu0 %2324
    %v2326 = vsub.f32 %v2278, %v2295
    %v2327 = vsub.f32 %v2279, %v2297
    %v2328 = vsub.f32 %v2280, %v2299
    %v2329 = vsub.f32 %v2281, %v2301
    %v2330 = vsub.f32 %v2282, %v2303
    %v2331 = vsub.f32 %v2283, %v2305
    %v2332 = vsub.f32 %v2284, %v2307
    %v2333 = vsub.f32 %v2285, %v2309
    %v2334 = vsub.f32 %v2286, %v2311
    %v2335 = vsub.f32 %v2287, %v2313
    %v2336 = vsub.f32 %v2288, %v2315
    %v2337 = vsub.f32 %v2289, %v2317
    %v2338 = vsub.f32 %v2290, %v2319
    %v2339 = vsub.f32 %v2291, %v2321
    %v2340 = vsub.f32 %v2292, %v2323
    %v2341 = vsub.f32 %v2293, %v2325
    %v2342 = vmul.f32 %v2326, 1.442695
    %v2343 = vpow.pop %v2342
    %v2344 = vmul.f32 %v2327, 1.442695
    %v2345 = vpow.pop %v2344
    %v2346 = vmul.f32 %v2328, 1.442695
    %v2347 = vpow.pop %v2346
    %v2348 = vmul.f32 %v2329, 1.442695
    %v2349 = vpow.pop %v2348
    %v2350 = vmul.f32 %v2330, 1.442695
    %v2351 = vpow.pop %v2350
    %v2352 = vmul.f32 %v2331, 1.442695
    %v2353 = vpow.pop %v2352
    %v2354 = vmul.f32 %v2332, 1.442695
    %v2355 = vpow.pop %v2354
    %v2356 = vmul.f32 %v2333, 1.442695
    %v2357 = vpow.pop %v2356
    %v2358 = vmul.f32 %v2334, 1.442695
    %v2359 = vpow.pop %v2358
    %v2360 = vmul.f32 %v2335, 1.442695
    %v2361 = vpow.pop %v2360
    %v2362 = vmul.f32 %v2336, 1.442695
    %v2363 = vpow.pop %v2362
    %v2364 = vmul.f32 %v2337, 1.442695
    %v2365 = vpow.pop %v2364
    %v2366 = vmul.f32 %v2338, 1.442695
    %v2367 = vpow.pop %v2366
    %v2368 = vmul.f32 %v2339, 1.442695
    %v2369 = vpow.pop %v2368
    %v2370 = vmul.f32 %v2340, 1.442695
    %v2371 = vpow.pop %v2370
    %v2372 = vmul.f32 %v2341, 1.442695
    %v2373 = vpow.pop %v2372
    %2374 = vadd.xlane.f32.xlu0 %v2343
    %v2375 = vpop.xlane.xlu0 %2374
    %2376 = vadd.xlane.f32.xlu0 %v2345
    %v2377 = vpop.xlane.xlu0 %2376
    %2378 = vadd.xlane.f32.xlu0 %v2347
    %v2379 = vpop.xlane.xlu0 %2378
    %2380 = vadd.xlane.f32.xlu0 %v2349
    %v2381 = vpop.xlane.xlu0 %2380
    %2382 = vadd.xlane.f32.xlu0 %v2351
    %v2383 = vpop.xlane.xlu0 %2382
    %2384 = vadd.xlane.f32.xlu0 %v2353
    %v2385 = vpop.xlane.xlu0 %2384
    %2386 = vadd.xlane.f32.xlu0 %v2355
    %v2387 = vpop.xlane.xlu0 %2386
    %2388 = vadd.xlane.f32.xlu0 %v2357
    %v2389 = vpop.xlane.xlu0 %2388
    %2390 = vadd.xlane.f32.xlu0 %v2359
    %v2391 = vpop.xlane.xlu0 %2390
    %2392 = vadd.xlane.f32.xlu0 %v2361
    %v2393 = vpop.xlane.xlu0 %2392
    %2394 = vadd.xlane.f32.xlu0 %v2363
    %v2395 = vpop.xlane.xlu0 %2394
    %2396 = vadd.xlane.f32.xlu0 %v2365
    %v2397 = vpop.xlane.xlu0 %2396
    %2398 = vadd.xlane.f32.xlu0 %v2367
    %v2399 = vpop.xlane.xlu0 %2398
    %2400 = vadd.xlane.f32.xlu0 %v2369
    %v2401 = vpop.xlane.xlu0 %2400
    %2402 = vadd.xlane.f32.xlu0 %v2371
    %v2403 = vpop.xlane.xlu0 %2402
    %2404 = vadd.xlane.f32.xlu0 %v2373
    %v2405 = vpop.xlane.xlu0 %2404
    %v2406 = vlog2.pop %v2375
    %v2407 = vmul.f32 %v2406, 0.6931472
    %v2408 = vlog2.pop %v2377
    %v2409 = vmul.f32 %v2408, 0.6931472
    %v2410 = vlog2.pop %v2379
    %v2411 = vmul.f32 %v2410, 0.6931472
    %v2412 = vlog2.pop %v2381
    %v2413 = vmul.f32 %v2412, 0.6931472
    %v2414 = vlog2.pop %v2383
    %v2415 = vmul.f32 %v2414, 0.6931472
    %v2416 = vlog2.pop %v2385
    %v2417 = vmul.f32 %v2416, 0.6931472
    %v2418 = vlog2.pop %v2387
    %v2419 = vmul.f32 %v2418, 0.6931472
    %v2420 = vlog2.pop %v2389
    %v2421 = vmul.f32 %v2420, 0.6931472
    %v2422 = vlog2.pop %v2391
    %v2423 = vmul.f32 %v2422, 0.6931472
    %v2424 = vlog2.pop %v2393
    %v2425 = vmul.f32 %v2424, 0.6931472
    %v2426 = vlog2.pop %v2395
    %v2427 = vmul.f32 %v2426, 0.6931472
    %v2428 = vlog2.pop %v2397
    %v2429 = vmul.f32 %v2428, 0.6931472
    %v2430 = vlog2.pop %v2399
    %v2431 = vmul.f32 %v2430, 0.6931472
    %v2432 = vlog2.pop %v2401
    %v2433 = vmul.f32 %v2432, 0.6931472
    %v2434 = vlog2.pop %v2403
    %v2435 = vmul.f32 %v2434, 0.6931472
    %v2436 = vlog2.pop %v2405
    %v2437 = vmul.f32 %v2436, 0.6931472
    %v2438 = vsub.f32 %v2326, %v2407
    %v2439 = vsub.f32 %v2327, %v2409
    %v2440 = vsub.f32 %v2328, %v2411
    %v2441 = vsub.f32 %v2329, %v2413
    %v2442 = vsub.f32 %v2330, %v2415
    %v2443 = vsub.f32 %v2331, %v2417
    %v2444 = vsub.f32 %v2332, %v2419
    %v2445 = vsub.f32 %v2333, %v2421
    %v2446 = vsub.f32 %v2334, %v2423
    %v2447 = vsub.f32 %v2335, %v2425
    %v2448 = vsub.f32 %v2336, %v2427
    %v2449 = vsub.f32 %v2337, %v2429
    %v2450 = vsub.f32 %v2338, %v2431
    %v2451 = vsub.f32 %v2339, %v2433
    %v2452 = vsub.f32 %v2340, %v2435
    %v2453 = vsub.f32 %v2341, %v2437
    %2454 = vst [vmem:[%s13] sm:$0xff] %v2438
    %2455 = vst [vmem:[%s13 + $0x8] sm:$0xff] %v2439
    %2456 = vst [vmem:[%s13 + $0x10] sm:$0xff] %v2440
    %2457 = vst [vmem:[%s13 + $0x18] sm:$0xff] %v2441
    %2458 = vst [vmem:[%s13 + $0x20] sm:$0xff] %v2442
    %2459 = vst [vmem:[%s13 + $0x28] sm:$0xff] %v2443
    %2460 = vst [vmem:[%s13 + $0x30] sm:$0xff] %v2444
    %2461 = vst [vmem:[%s13 + $0x38] sm:$0xff] %v2445
    %2462 = vst [vmem:[%s13 + $0x40] sm:$0xff] %v2446
    %2463 = vst [vmem:[%s13 + $0x48] sm:$0xff] %v2447
    %2464 = vst [vmem:[%s13 + $0x50] sm:$0xff] %v2448
    %2465 = vst [vmem:[%s13 + $0x58] sm:$0xff] %v2449
    %2466 = vst [vmem:[%s13 + $0x60] sm:$0xff] %v2450
    %2467 = vst [vmem:[%s13 + $0x68] sm:$0xff] %v2451
    %2468 = vst [vmem:[%s13 + $0x70] sm:$0xff] %v2452
    %2469 = vst [vmem:[%s13 + $0x78] sm:$0xff] %v2453
    // Predicated region
    $region102: #{fwd.1} parent=1 // pred_check
      _
    $region103: #{fwd.1} parent=1 // pred_check_branch
      %2471 = sbr.rel (0) target = $region105
    $region104: #{fwd.1} parent=1 // pred_region
      _
    $region105: #{fwd.1} parent=1 // pred_fallthru
      _
    // Predicated region
    $region106: #{fwd.1} parent=1 // pred_check
      _
    $region107: #{fwd.1} parent=1 // pred_check_branch
      %2473 = sbr.rel (0) target = $region109
    $region108: #{fwd.1} parent=1 // pred_region
      _
    $region109: #{fwd.1} parent=1 // pred_fallthru
      _
    %2474 = vsyncpa [#allocation3], 1
    %2475 = vsyncpa [#allocation5], 1
    %2476 = vsyncpa [#allocation8], 1
    %2477 = vsyncpa [#allocation11], 1
    %2478 = vsyncpa [#allocation14], 1
    %2479 = vsyncpa [#allocation17], 1
    %2480 = vsyncpa [#allocation20], 1

</llo_original>
